<compile_context>
chip_gen: v7x
topology: tpu7x:2x2x1
jax: 0.10.0
libtpu: 0.0.40
codegen_flags: <defaults>
</compile_context>

<pallas_src>
import jax
import jax.numpy as jnp
from jax.experimental import pallas as pl
from jax.experimental.pallas import tpu as pltpu

LATENT_DIM = 64
NUM_CLASSES = 10
IN_FEATURES = LATENT_DIM + NUM_CLASSES   # 74
IN_PAD = 128                             # lane-aligned K for layer 1
HIDDEN_1 = 512
HIDDEN_2 = 256
OUT_FEATURES = 28 * 28                   # 784


def _round_up(n, m):
    return ((n + m - 1) // m) * m


def _mlp_decoder_kernel(zc_ref, w1_ref, b1_ref, w2_ref, b2_ref,
                        w3_ref, b3_ref, out_ref):
    # Layer 1: Linear(74 -> 512) + ReLU (single K=128 zero-padded matmul).
    zc = zc_ref[...].astype(jnp.bfloat16)                       # (TB, 128)
    h1 = jnp.dot(zc, w1_ref[...], preferred_element_type=jnp.float32)
    h1 = jnp.maximum(h1 + b1_ref[...], 0.0)                     # (TB, 512)

    # Layer 2: Linear(512 -> 256) + ReLU.
    h2 = jnp.dot(h1.astype(jnp.bfloat16), w2_ref[...],
                 preferred_element_type=jnp.float32)
    h2 = jnp.maximum(h2 + b2_ref[...], 0.0)                     # (TB, 256)

    # Layer 3: Linear(256 -> 784) + Sigmoid.
    h3 = jnp.dot(h2.astype(jnp.bfloat16), w3_ref[...],
                 preferred_element_type=jnp.float32)
    h3 = h3 + b3_ref[...]                                       # (TB, 784)
    # sigmoid(x) = 1 / (1 + exp(-x)); exp -> EUP, approx reciprocal -> EUP,
    # keeping the (TB, 784) f32 epilogue off the VALU divide path.
    out_ref[...] = pl.reciprocal(1.0 + jnp.exp(-h3),
                                 approx=True).astype(out_ref.dtype)


def mlp_decoder_forward(z, c, params):
    """z: (B, latent_dim) f32; c: (B, num_classes) f32 one-hot.

    Returns (B, 1, 28, 28) f32, matching MLPDecoder.forward.
    """
    B = z.shape[0]
    w1, b1, w2, b2, w3, b3 = params      # w1: (128, 512) bf16, rows 74.. are 0
    b1 = b1.reshape(1, HIDDEN_1)
    b2 = b2.reshape(1, HIDDEN_2)
    b3 = b3.reshape(1, OUT_FEATURES)

    # Fuse concat + pad to a lane-dense (B, 128) layer-1 input in the wrapper.
    zc = jnp.concatenate([z, c], axis=1)                        # (B, 74)
    zc = jnp.pad(zc, ((0, 0), (0, IN_PAD - IN_FEATURES)))       # (B, 128)

    # Row tile: as large as possible (amortizes ~0.35 us/step overhead) while
    # guaranteeing >=2 grid steps (v7x megacore) and fitting v5e's 16 MiB
    # default scoped VMEM (TB=512 footprint is ~9 MiB incl. double buffers).
    TB = min(512, _round_up(pl.cdiv(B, 2), 8))
    grid = (pl.cdiv(B, TB),)

    flops = 2 * B * (IN_PAD * HIDDEN_1
                     + HIDDEN_1 * HIDDEN_2
                     + HIDDEN_2 * OUT_FEATURES)
    bytes_accessed = (
        B * (IN_PAD + OUT_FEATURES) * 4
        + (IN_PAD * HIDDEN_1 + HIDDEN_1 * HIDDEN_2
           + HIDDEN_2 * OUT_FEATURES) * 2
        + (HIDDEN_1 + HIDDEN_2 + OUT_FEATURES) * 4
    )

    out_flat = pl.pallas_call(
        _mlp_decoder_kernel,
        out_shape=jax.ShapeDtypeStruct((B, OUT_FEATURES), jnp.float32),
        grid=grid,
        in_specs=[
            pl.BlockSpec((TB, IN_PAD), lambda i: (i, 0)),            # zc tile
            pl.BlockSpec((IN_PAD, HIDDEN_1), lambda i: (0, 0)),      # W1
            pl.BlockSpec((1, HIDDEN_1), lambda i: (0, 0)),           # b1
            pl.BlockSpec((HIDDEN_1, HIDDEN_2), lambda i: (0, 0)),    # W2
            pl.BlockSpec((1, HIDDEN_2), lambda i: (0, 0)),           # b2
            pl.BlockSpec((HIDDEN_2, OUT_FEATURES), lambda i: (0, 0)),# W3
            pl.BlockSpec((1, OUT_FEATURES), lambda i: (0, 0)),       # b3
        ],
        out_specs=pl.BlockSpec((TB, OUT_FEATURES), lambda i: (i, 0)),
        compiler_params=pltpu.CompilerParams(
            dimension_semantics=("parallel",)),
        cost_estimate=pl.CostEstimate(
            flops=flops,
            transcendentals=B * OUT_FEATURES,
            bytes_accessed=bytes_accessed),
    )(zc, w1, b1, w2, b2, w3, b3)

    return out_flat.reshape(B, 1, 28, 28)


def init_params(key):
    """PyTorch-style uniform(-1/sqrt(fan_in), 1/sqrt(fan_in)) init.

    Weights are stored as (in, out) so the kernel does x @ W (equivalent to
    PyTorch x @ W.T with W of shape (out, in)), cast to bf16 for storage.
    W1 is zero-padded from 74 -> 128 input rows so layer 1 is one
    lane-aligned matmul against the zero-padded [z|c|0] input.
    """
    k1, k2, k3, k4, k5, k6 = jax.random.split(key, 6)
    bound1 = 1.0 / jnp.sqrt(IN_FEATURES)
    bound2 = 1.0 / jnp.sqrt(HIDDEN_1)
    bound3 = 1.0 / jnp.sqrt(HIDDEN_2)

    w1 = jax.random.uniform(k1, (IN_FEATURES, HIDDEN_1), jnp.float32, -bound1, bound1)
    b1 = jax.random.uniform(k2, (HIDDEN_1,), jnp.float32, -bound1, bound1)
    w2 = jax.random.uniform(k3, (HIDDEN_1, HIDDEN_2), jnp.float32, -bound2, bound2)
    b2 = jax.random.uniform(k4, (HIDDEN_2,), jnp.float32, -bound2, bound2)
    w3 = jax.random.uniform(k5, (HIDDEN_2, OUT_FEATURES), jnp.float32, -bound3, bound3)
    b3 = jax.random.uniform(k6, (OUT_FEATURES,), jnp.float32, -bound3, bound3)

    w1_pad = jnp.zeros((IN_PAD, HIDDEN_1), jnp.float32).at[:IN_FEATURES].set(w1)
    return (w1_pad.astype(jnp.bfloat16), b1,
            w2.astype(jnp.bfloat16), b2,
            w3.astype(jnp.bfloat16), b3)


def _reference(z, c, params):
    """Pure-JAX f32 reference of MLPDecoder.forward.

    Note: weights are already bf16-quantized, so this checks kernel-vs-JAX
    consistency given those weights (true drift vs. f32 PyTorch is larger).
    """
    w1, b1, w2, b2, w3, b3 = params
    w1 = w1[:IN_FEATURES].astype(jnp.float32)
    zc = jnp.concatenate([z, c], axis=1)
    h1 = jnp.maximum(zc @ w1 + b1, 0.0)
    h2 = jnp.maximum(h1 @ w2.astype(jnp.float32) + b2, 0.0)
    out = jax.nn.sigmoid(h2 @ w3.astype(jnp.float32) + b3)
    return out.reshape(-1, 1, 28, 28)


if __name__ == "__main__":
    key = jax.random.PRNGKey(0)
    kz, kc, kp = jax.random.split(key, 3)

    B = 2
    z = jax.random.normal(kz, (B, LATENT_DIM), jnp.float32)
    labels = jax.random.randint(kc, (B,), 0, NUM_CLASSES)
    c = jax.nn.one_hot(labels, NUM_CLASSES, dtype=jnp.float32)

    params = init_params(kp)

    out = mlp_decoder_forward(z, c, params)
    out = jax.block_until_ready(out)

    ref = _reference(z, c, params)
    assert out.shape == (B, 1, 28, 28)
    # bf16 weights/activations + approx reciprocal, f32 accumulation.
    assert jnp.allclose(out, ref, atol=2e-2, rtol=2e-2), (
        float(jnp.max(jnp.abs(out - ref))))

    print("KERNEL_OK")
</pallas_src>

<mosaic_0001>
module attributes {stable_mosaic.version = 11 : i64} {
  func.func @_mlp_decoder_kernel(%arg0: i32, %arg1: memref<8x128xf32, #tpu.memory_space<vmem>>, %arg2: memref<128x512xbf16, #tpu.memory_space<vmem>>, %arg3: memref<1x512xf32, #tpu.memory_space<vmem>>, %arg4: memref<512x256xbf16, #tpu.memory_space<vmem>>, %arg5: memref<1x256xf32, #tpu.memory_space<vmem>>, %arg6: memref<256x784xbf16, #tpu.memory_space<vmem>>, %arg7: memref<1x784xf32, #tpu.memory_space<vmem>>, %arg8: memref<8x784xf32, #tpu.memory_space<vmem>>) attributes {dimension_semantics = [#tpu.dimension_semantics<parallel>], iteration_bounds = array<i64: 1>, scalar_prefetch = 0 : i64, scratch_operands = 0 : i64, tpu.core_type = #tpu.core_type<tc>, window_params = [{transform_indices = @transform_0, window_bounds = array<i64: 8, 128>}, {pipeline_mode = #tpu.pipeline_mode<synchronous>, transform_indices = @transform_1, window_bounds = array<i64: 128, 512>}, {pipeline_mode = #tpu.pipeline_mode<synchronous>, transform_indices = @transform_2, window_bounds = array<i64: 1, 512>}, {pipeline_mode = #tpu.pipeline_mode<synchronous>, transform_indices = @transform_3, window_bounds = array<i64: 512, 256>}, {pipeline_mode = #tpu.pipeline_mode<synchronous>, transform_indices = @transform_4, window_bounds = array<i64: 1, 256>}, {pipeline_mode = #tpu.pipeline_mode<synchronous>, transform_indices = @transform_5, window_bounds = array<i64: 256, 784>}, {pipeline_mode = #tpu.pipeline_mode<synchronous>, transform_indices = @transform_6, window_bounds = array<i64: 1, 784>}, {transform_indices = @transform_7, window_bounds = array<i64: 8, 784>}]} {
    %c0 = arith.constant 0 : index
    %c0_0 = arith.constant 0 : index
    %0 = vector.load %arg1[%c0, %c0_0] : memref<8x128xf32, #tpu.memory_space<vmem>>, vector<8x128xf32>
    %1 = arith.truncf %0 : vector<8x128xf32> to vector<8x128xbf16>
    %c0_1 = arith.constant 0 : index
    %c0_2 = arith.constant 0 : index
    %2 = vector.load %arg2[%c0_1, %c0_2] : memref<128x512xbf16, #tpu.memory_space<vmem>>, vector<128x512xbf16>
    %cst = arith.constant dense<0.000000e+00> : vector<8x512xf32>
    %3 = tpu.matmul %1, %2, %cst {dimension_numbers = #tpu.dot_dimension_numbers<[1], [0], [0], [1], [0, 0, 1, 1], [], []>} : vector<8x128xbf16>, vector<128x512xbf16>, vector<8x512xf32> -> vector<8x512xf32>
    %c0_3 = arith.constant 0 : index
    %c0_4 = arith.constant 0 : index
    %4 = vector.load %arg3[%c0_3, %c0_4] : memref<1x512xf32, #tpu.memory_space<vmem>>, vector<1x512xf32>
    %5 = vector.broadcast %4 : vector<1x512xf32> to vector<8x512xf32>
    %6 = arith.addf %3, %5 : vector<8x512xf32>
    %cst_5 = arith.constant 0.000000e+00 : f32
    %7 = vector.broadcast %cst_5 : f32 to vector<8x512xf32>
    %8 = arith.maximumf %6, %7 : vector<8x512xf32>
    %9 = arith.truncf %8 : vector<8x512xf32> to vector<8x512xbf16>
    %c0_6 = arith.constant 0 : index
    %c0_7 = arith.constant 0 : index
    %10 = vector.load %arg4[%c0_6, %c0_7] : memref<512x256xbf16, #tpu.memory_space<vmem>>, vector<512x256xbf16>
    %cst_8 = arith.constant dense<0.000000e+00> : vector<8x256xf32>
    %11 = tpu.matmul %9, %10, %cst_8 {dimension_numbers = #tpu.dot_dimension_numbers<[1], [0], [0], [1], [0, 0, 1, 1], [], []>} : vector<8x512xbf16>, vector<512x256xbf16>, vector<8x256xf32> -> vector<8x256xf32>
    %c0_9 = arith.constant 0 : index
    %c0_10 = arith.constant 0 : index
    %12 = vector.load %arg5[%c0_9, %c0_10] : memref<1x256xf32, #tpu.memory_space<vmem>>, vector<1x256xf32>
    %13 = vector.broadcast %12 : vector<1x256xf32> to vector<8x256xf32>
    %14 = arith.addf %11, %13 : vector<8x256xf32>
    %cst_11 = arith.constant 0.000000e+00 : f32
    %15 = vector.broadcast %cst_11 : f32 to vector<8x256xf32>
    %16 = arith.maximumf %14, %15 : vector<8x256xf32>
    %17 = arith.truncf %16 : vector<8x256xf32> to vector<8x256xbf16>
    %c0_12 = arith.constant 0 : index
    %c0_13 = arith.constant 0 : index
    %18 = vector.load %arg6[%c0_12, %c0_13] : memref<256x784xbf16, #tpu.memory_space<vmem>>, vector<256x784xbf16>
    %cst_14 = arith.constant dense<0.000000e+00> : vector<8x784xf32>
    %19 = tpu.matmul %17, %18, %cst_14 {dimension_numbers = #tpu.dot_dimension_numbers<[1], [0], [0], [1], [0, 0, 1, 1], [], []>} : vector<8x256xbf16>, vector<256x784xbf16>, vector<8x784xf32> -> vector<8x784xf32>
    %c0_15 = arith.constant 0 : index
    %c0_16 = arith.constant 0 : index
    %20 = vector.load %arg7[%c0_15, %c0_16] : memref<1x784xf32, #tpu.memory_space<vmem>>, vector<1x784xf32>
    %21 = vector.broadcast %20 : vector<1x784xf32> to vector<8x784xf32>
    %22 = arith.addf %19, %21 : vector<8x784xf32>
    %cst_17 = arith.constant 0.000000e+00 : f32
    %23 = vector.broadcast %cst_17 : f32 to vector<8x784xf32>
    %24 = arith.subf %23, %22 : vector<8x784xf32>
    %25 = math.exp %24 : vector<8x784xf32>
    %cst_18 = arith.constant 1.000000e+00 : f32
    %26 = vector.broadcast %cst_18 : f32 to vector<8x784xf32>
    %27 = arith.addf %26, %25 : vector<8x784xf32>
    %28 = tpu.reciprocal %27 {approx = true} : vector<8x784xf32> -> vector<8x784xf32>
    %c0_19 = arith.constant 0 : index
    %c0_20 = arith.constant 0 : index
    %29 = vector.load %arg8[%c0_19, %c0_20] : memref<8x784xf32, #tpu.memory_space<vmem>>, vector<8x784xf32>
    tpu.vector_store %arg8[%c0_19, %c0_20], %28 {strides = array<i32>} : memref<8x784xf32, #tpu.memory_space<vmem>>, vector<8x784xf32>,
    return
  }
  func.func @transform_0(%arg0: i32) -> (i32, i32) {
    %c0_i32 = arith.constant 0 : i32
    %c0_i32_0 = arith.constant 0 : i32
    return %arg0, %c0_i32 : i32, i32
  }
  func.func @transform_1(%arg0: i32) -> (i32, i32) {
    %c0_i32 = arith.constant 0 : i32
    %c0_i32_0 = arith.constant 0 : i32
    %c0_i32_1 = arith.constant 0 : i32
    return %c0_i32, %c0_i32_0 : i32, i32
  }
  func.func @transform_2(%arg0: i32) -> (i32, i32) {
    %c0_i32 = arith.constant 0 : i32
    %c0_i32_0 = arith.constant 0 : i32
    %c0_i32_1 = arith.constant 0 : i32
    return %c0_i32, %c0_i32_0 : i32, i32
  }
  func.func @transform_3(%arg0: i32) -> (i32, i32) {
    %c0_i32 = arith.constant 0 : i32
    %c0_i32_0 = arith.constant 0 : i32
    %c0_i32_1 = arith.constant 0 : i32
    return %c0_i32, %c0_i32_0 : i32, i32
  }
  func.func @transform_4(%arg0: i32) -> (i32, i32) {
    %c0_i32 = arith.constant 0 : i32
    %c0_i32_0 = arith.constant 0 : i32
    %c0_i32_1 = arith.constant 0 : i32
    return %c0_i32, %c0_i32_0 : i32, i32
  }
  func.func @transform_5(%arg0: i32) -> (i32, i32) {
    %c0_i32 = arith.constant 0 : i32
    %c0_i32_0 = arith.constant 0 : i32
    %c0_i32_1 = arith.constant 0 : i32
    return %c0_i32, %c0_i32_0 : i32, i32
  }
  func.func @transform_6(%arg0: i32) -> (i32, i32) {
    %c0_i32 = arith.constant 0 : i32
    %c0_i32_0 = arith.constant 0 : i32
    %c0_i32_1 = arith.constant 0 : i32
    return %c0_i32, %c0_i32_0 : i32, i32
  }
  func.func @transform_7(%arg0: i32) -> (i32, i32) {
    %c0_i32 = arith.constant 0 : i32
    %c0_i32_0 = arith.constant 0 : i32
    return %arg0, %c0_i32 : i32, i32
  }
}

</mosaic_0001>

<llo_original>
// kernel: tpu_custom_call.1
$region0: #{tpu_custom_call.1}
  #allocation0 [shape = 'u32[]', space=smem, size = 0x4, offset = 0x4, fixed_abs, tag = 'smem constant byte address 0x4 - core index']
  #allocation1 [shape = 'u32[144,128]{1,0:T(1,128)}', space=vmem, size = 0x12000, scoped, tag = 'internal scratch']
  %s0 = inlined_call_operand.vmem [shape: f32[2,128], index: 0, kind: input, shape index: {}]
  %s1 = inlined_call_operand.vmem [shape: bf16[128,512], index: 1, kind: input, shape index: {}]
  %s2 = inlined_call_operand.vmem [shape: f32[1,512], index: 2, kind: input, shape index: {}]
  %s3 = inlined_call_operand.vmem [shape: bf16[512,256], index: 3, kind: input, shape index: {}]
  %s4 = inlined_call_operand.vmem [shape: f32[1,256], index: 4, kind: input, shape index: {}]
  %s5 = inlined_call_operand.vmem [shape: bf16[256,784], index: 5, kind: input, shape index: {}]
  %s6 = inlined_call_operand.vmem [shape: f32[1,784], index: 6, kind: input, shape index: {}]
  %s7 = inlined_call_operand.hbm [shape: f32[2,784], index: 7, kind: output, shape index: {}]
  %s8 = sld [smem:[#allocation0]]
  $region38: #{tpu_custom_call.1} parent=0
    _
  %s10 = ssub.s32 1, %s8
  %s11 = scalar_select 0, %s10, %s8
  $region1: #{tpu_custom_call.1} parent=0
    #allocation2 [shape = 'u8[28672]{0}', space=vmem, size = 0x7000, scoped, tag = 'output window, operand 0, single buffered']
    #allocation3 [shape = 's32[1]{0}', space=sflag, size = 0x4, scoped, tag = 'scoped memory for tpu_custom_call.1']
    %12 = vsyncpa [#allocation3], 0
    // Predicated region
    $region2: #{tpu_custom_call.1} parent=1 // pred_check
      _
    $region3: #{tpu_custom_call.1} parent=1 // pred_check_branch
      %14 = sbr.rel (0) target = $region5
    $region4: #{tpu_custom_call.1} parent=1 // pred_region
      _
    $region5: #{tpu_custom_call.1} parent=1 // pred_fallthru
      _
    // Predicated region
    $region6: #{tpu_custom_call.1} parent=1 // pred_check
      _
    $region7: #{tpu_custom_call.1} parent=1 // pred_check_branch
      %16 = sbr.rel (0) target = $region9
    $region8: #{tpu_custom_call.1} parent=1 // pred_region
      _
    $region9: #{tpu_custom_call.1} parent=1 // pred_fallthru
      _
    // Predicated region
    $region10: #{tpu_custom_call.1} parent=1 // pred_check
      _
    $region11: #{tpu_custom_call.1} parent=1 // pred_check_branch
      %18 = sbr.rel (0) target = $region13
    $region12: #{tpu_custom_call.1} parent=1 // pred_region
      _
    $region13: #{tpu_custom_call.1} parent=1 // pred_fallthru
      _
    // Predicated region
    $region14: #{tpu_custom_call.1} parent=1 // pred_check
      _
    $region15: #{tpu_custom_call.1} parent=1 // pred_check_branch
      %20 = sbr.rel (0) target = $region17
    $region16: #{tpu_custom_call.1} parent=1 // pred_region
      _
    $region17: #{tpu_custom_call.1} parent=1 // pred_fallthru
      _
    // Predicated region
    $region18: #{tpu_custom_call.1} parent=1 // pred_check
      _
    $region19: #{tpu_custom_call.1} parent=1 // pred_check_branch
      %22 = sbr.rel (0) target = $region21
    $region20: #{tpu_custom_call.1} parent=1 // pred_region
      _
    $region21: #{tpu_custom_call.1} parent=1 // pred_fallthru
      _
    // Predicated region
    $region22: #{tpu_custom_call.1} parent=1 // pred_check
      _
    $region23: #{tpu_custom_call.1} parent=1 // pred_check_branch
      %24 = sbr.rel (0) target = $region25
    $region24: #{tpu_custom_call.1} parent=1 // pred_region
      _
    $region25: #{tpu_custom_call.1} parent=1 // pred_fallthru
      _
    // Predicated region
    $region26: #{tpu_custom_call.1} parent=1 // pred_check
      _
    $region27: #{tpu_custom_call.1} parent=1 // pred_check_branch
      %26 = sbr.rel (0) target = $region29
    $region28: #{tpu_custom_call.1} parent=1 // pred_region
      _
    $region29: #{tpu_custom_call.1} parent=1 // pred_fallthru
      _
    %v28 = vld [vmem:[%s0] sm:$0xff]
    %v29 = vpack.c.bf16 %v28, %v28
    %v30 = vld [vmem:[%s1] sm:$0xff]
    %v31 = vld [vmem:[%s1 + $0x8] sm:$0xff]
    %v32 = vld [vmem:[%s1 + $0x10] sm:$0xff]
    %v33 = vld [vmem:[%s1 + $0x18] sm:$0xff]
    %v34 = vld [vmem:[%s1 + $0x20] sm:$0xff]
    %v35 = vld [vmem:[%s1 + $0x28] sm:$0xff]
    %v36 = vld [vmem:[%s1 + $0x30] sm:$0xff]
    %v37 = vld [vmem:[%s1 + $0x38] sm:$0xff]
    %v38 = vld [vmem:[%s1 + $0x40] sm:$0xff]
    %v39 = vld [vmem:[%s1 + $0x48] sm:$0xff]
    %v40 = vld [vmem:[%s1 + $0x50] sm:$0xff]
    %v41 = vld [vmem:[%s1 + $0x58] sm:$0xff]
    %v42 = vld [vmem:[%s1 + $0x60] sm:$0xff]
    %v43 = vld [vmem:[%s1 + $0x68] sm:$0xff]
    %v44 = vld [vmem:[%s1 + $0x70] sm:$0xff]
    %v45 = vld [vmem:[%s1 + $0x78] sm:$0xff]
    %v46 = vld [vmem:[%s1 + $0x80] sm:$0xff]
    %v47 = vld [vmem:[%s1 + $0x88] sm:$0xff]
    %v48 = vld [vmem:[%s1 + $0x90] sm:$0xff]
    %v49 = vld [vmem:[%s1 + $0x98] sm:$0xff]
    %v50 = vld [vmem:[%s1 + $0xa0] sm:$0xff]
    %v51 = vld [vmem:[%s1 + $0xa8] sm:$0xff]
    %v52 = vld [vmem:[%s1 + $0xb0] sm:$0xff]
    %v53 = vld [vmem:[%s1 + $0xb8] sm:$0xff]
    %v54 = vld [vmem:[%s1 + $0xc0] sm:$0xff]
    %v55 = vld [vmem:[%s1 + $0xc8] sm:$0xff]
    %v56 = vld [vmem:[%s1 + $0xd0] sm:$0xff]
    %v57 = vld [vmem:[%s1 + $0xd8] sm:$0xff]
    %v58 = vld [vmem:[%s1 + $0xe0] sm:$0xff]
    %v59 = vld [vmem:[%s1 + $0xe8] sm:$0xff]
    %v60 = vld [vmem:[%s1 + $0xf0] sm:$0xff]
    %v61 = vld [vmem:[%s1 + $0xf8] sm:$0xff]
    %v62 = vld [vmem:[%s2] sm:$0xf]
    %v64 = vlaneseq
    %v65 = vshrl.u32 %v64, 7
    %v66 = vsub.s32 0, %v65
    %v67 = vrot.slane %v62, %v66
    %v68 = vlaneseq
    %v69 = vshrl.u32 %v68, 7
    %v70 = vsub.s32 1, %v69
    %v71 = vrot.slane %v62, %v70
    %v72 = vlaneseq
    %v73 = vshrl.u32 %v72, 7
    %v74 = vsub.s32 2, %v73
    %v75 = vrot.slane %v62, %v74
    %v76 = vlaneseq
    %v77 = vshrl.u32 %v76, 7
    %v78 = vsub.s32 3, %v77
    %v79 = vrot.slane %v62, %v78
    %v116 = vunpack.c.l.b16 %v30
    %v117 = vunpack.c.h.b16 %v30
    %v118 = vunpack.c.l.b16 %v31
    %v119 = vunpack.c.h.b16 %v31
    %v120 = vunpack.c.l.b16 %v32
    %v121 = vunpack.c.h.b16 %v32
    %v122 = vunpack.c.l.b16 %v33
    %v123 = vunpack.c.h.b16 %v33
    %v124 = vunpack.c.l.b16 %v34
    %v125 = vunpack.c.h.b16 %v34
    %v126 = vunpack.c.l.b16 %v35
    %v127 = vunpack.c.h.b16 %v35
    %v128 = vunpack.c.l.b16 %v36
    %v129 = vunpack.c.h.b16 %v36
    %v130 = vunpack.c.l.b16 %v37
    %v131 = vunpack.c.h.b16 %v37
    %v132 = vunpack.c.l.b16 %v38
    %v133 = vunpack.c.h.b16 %v38
    %v134 = vunpack.c.l.b16 %v39
    %v135 = vunpack.c.h.b16 %v39
    %v136 = vunpack.c.l.b16 %v40
    %v137 = vunpack.c.h.b16 %v40
    %v138 = vunpack.c.l.b16 %v41
    %v139 = vunpack.c.h.b16 %v41
    %v140 = vunpack.c.l.b16 %v42
    %v141 = vunpack.c.h.b16 %v42
    %v142 = vunpack.c.l.b16 %v43
    %v143 = vunpack.c.h.b16 %v43
    %v144 = vunpack.c.l.b16 %v44
    %v145 = vunpack.c.h.b16 %v44
    %v146 = vunpack.c.l.b16 %v45
    %v147 = vunpack.c.h.b16 %v45
    %v148 = vunpack.c.l.b16 %v46
    %v149 = vunpack.c.h.b16 %v46
    %v150 = vunpack.c.l.b16 %v47
    %v151 = vunpack.c.h.b16 %v47
    %v152 = vunpack.c.l.b16 %v48
    %v153 = vunpack.c.h.b16 %v48
    %v154 = vunpack.c.l.b16 %v49
    %v155 = vunpack.c.h.b16 %v49
    %v156 = vunpack.c.l.b16 %v50
    %v157 = vunpack.c.h.b16 %v50
    %v158 = vunpack.c.l.b16 %v51
    %v159 = vunpack.c.h.b16 %v51
    %v160 = vunpack.c.l.b16 %v52
    %v161 = vunpack.c.h.b16 %v52
    %v162 = vunpack.c.l.b16 %v53
    %v163 = vunpack.c.h.b16 %v53
    %v164 = vunpack.c.l.b16 %v54
    %v165 = vunpack.c.h.b16 %v54
    %v166 = vunpack.c.l.b16 %v55
    %v167 = vunpack.c.h.b16 %v55
    %v168 = vunpack.c.l.b16 %v56
    %v169 = vunpack.c.h.b16 %v56
    %v170 = vunpack.c.l.b16 %v57
    %v171 = vunpack.c.h.b16 %v57
    %v172 = vunpack.c.l.b16 %v58
    %v173 = vunpack.c.h.b16 %v58
    %v174 = vunpack.c.l.b16 %v59
    %v175 = vunpack.c.h.b16 %v59
    %v176 = vunpack.c.l.b16 %v60
    %v177 = vunpack.c.h.b16 %v60
    %v178 = vunpack.c.l.b16 %v61
    %v179 = vunpack.c.h.b16 %v61
    %v180 = vpack.c.b16 %v120, %v116
    %v181 = vpack.c.b16 %v121, %v117
    %v182 = vpack.c.b16 %v122, %v118
    %v183 = vpack.c.b16 %v123, %v119
    %v184 = vpack.c.b16 %v128, %v124
    %v185 = vpack.c.b16 %v129, %v125
    %v186 = vpack.c.b16 %v130, %v126
    %v187 = vpack.c.b16 %v131, %v127
    %v188 = vpack.c.b16 %v136, %v132
    %v189 = vpack.c.b16 %v137, %v133
    %v190 = vpack.c.b16 %v138, %v134
    %v191 = vpack.c.b16 %v139, %v135
    %v192 = vpack.c.b16 %v144, %v140
    %v193 = vpack.c.b16 %v145, %v141
    %v194 = vpack.c.b16 %v146, %v142
    %v195 = vpack.c.b16 %v147, %v143
    %v196 = vpack.c.b16 %v152, %v148
    %v197 = vpack.c.b16 %v153, %v149
    %v198 = vpack.c.b16 %v154, %v150
    %v199 = vpack.c.b16 %v155, %v151
    %v200 = vpack.c.b16 %v160, %v156
    %v201 = vpack.c.b16 %v161, %v157
    %v202 = vpack.c.b16 %v162, %v158
    %v203 = vpack.c.b16 %v163, %v159
    %v204 = vpack.c.b16 %v168, %v164
    %v205 = vpack.c.b16 %v169, %v165
    %v206 = vpack.c.b16 %v170, %v166
    %v207 = vpack.c.b16 %v171, %v167
    %v208 = vpack.c.b16 %v176, %v172
    %v209 = vpack.c.b16 %v177, %v173
    %v210 = vpack.c.b16 %v178, %v174
    %v211 = vpack.c.b16 %v179, %v175
    %244 = vmatprep.subr.bf16.mxu0 %v181
    %245 = vmatpush1.bf16.msra.mxu0 %v180
    %246 = vmatprep.subr.bf16.mxu0 %v185
    %247 = vmatpush1.bf16.msra.mxu0 %v184
    %248 = vmatprep.subr.bf16.mxu0 %v189
    %249 = vmatpush1.bf16.msra.mxu0 %v188
    %250 = vmatprep.subr.bf16.mxu0 %v193
    %251 = vmatpush1.bf16.msra.mxu0 %v192
    %252 = vmatprep.subr.bf16.mxu0 %v197
    %253 = vmatpush1.bf16.msra.mxu0 %v196
    %254 = vmatprep.subr.bf16.mxu0 %v201
    %255 = vmatpush1.bf16.msra.mxu0 %v200
    %256 = vmatprep.subr.bf16.mxu0 %v205
    %257 = vmatpush1.bf16.msra.mxu0 %v204
    %258 = vmatprep.subr.bf16.mxu0 %v209
    %259 = vmatpush1.bf16.msra.mxu0 %v208
    %260 = vmatprep.subr.bf16.mxu0 0
    %261 = vmatpush1.bf16.msra.mxu0 0
    %262 = vmatprep.subr.bf16.mxu0 0
    %263 = vmatpush1.bf16.msra.mxu0 0
    %264 = vmatprep.subr.bf16.mxu0 0
    %265 = vmatpush1.bf16.msra.mxu0 0
    %266 = vmatprep.subr.bf16.mxu0 0
    %267 = vmatpush1.bf16.msra.mxu0 0
    %268 = vmatprep.subr.bf16.mxu0 0
    %269 = vmatpush1.bf16.msra.mxu0 0
    %270 = vmatprep.subr.bf16.mxu0 0
    %271 = vmatpush1.bf16.msra.mxu0 0
    %272 = vmatprep.subr.bf16.mxu0 0
    %273 = vmatpush1.bf16.msra.mxu0 0
    %274 = vmatprep.subr.bf16.mxu0 0
    %275 = vmatpush1.bf16.msra.mxu0 0
    %276 = vmatprep.mubr.bf16.mxu0 0
    %277 = vmatmul.mubr.bf16.gmra.mrb[0].mxu0 %v29
    %v278 = vpop.f32.mrb[0].mxu0
    %v279 = vadd.f32 %v67, %v278
    %v280 = vpop.f32.mrb[0].mxu0
    %v281 = vadd.f32 %v71, %v280
    %v282 = vpop.f32.mrb[0].mxu0
    %v283 = vpop.f32.mrb[0].mxu0
    %284 = vdwg.mxu0
    %285 = vmatprep.subr.bf16.mxu0 %v183
    %286 = vmatpush1.bf16.msra.mxu0 %v182
    %287 = vmatprep.subr.bf16.mxu0 %v187
    %288 = vmatpush1.bf16.msra.mxu0 %v186
    %289 = vmatprep.subr.bf16.mxu0 %v191
    %290 = vmatpush1.bf16.msra.mxu0 %v190
    %291 = vmatprep.subr.bf16.mxu0 %v195
    %292 = vmatpush1.bf16.msra.mxu0 %v194
    %293 = vmatprep.subr.bf16.mxu0 %v199
    %294 = vmatpush1.bf16.msra.mxu0 %v198
    %295 = vmatprep.subr.bf16.mxu0 %v203
    %296 = vmatpush1.bf16.msra.mxu0 %v202
    %297 = vmatprep.subr.bf16.mxu0 %v207
    %298 = vmatpush1.bf16.msra.mxu0 %v206
    %299 = vmatprep.subr.bf16.mxu0 %v211
    %300 = vmatpush1.bf16.msra.mxu0 %v210
    %301 = vmatprep.subr.bf16.mxu0 0
    %302 = vmatpush1.bf16.msra.mxu0 0
    %303 = vmatprep.subr.bf16.mxu0 0
    %304 = vmatpush1.bf16.msra.mxu0 0
    %305 = vmatprep.subr.bf16.mxu0 0
    %306 = vmatpush1.bf16.msra.mxu0 0
    %307 = vmatprep.subr.bf16.mxu0 0
    %308 = vmatpush1.bf16.msra.mxu0 0
    %309 = vmatprep.subr.bf16.mxu0 0
    %310 = vmatpush1.bf16.msra.mxu0 0
    %311 = vmatprep.subr.bf16.mxu0 0
    %312 = vmatpush1.bf16.msra.mxu0 0
    %313 = vmatprep.subr.bf16.mxu0 0
    %314 = vmatpush1.bf16.msra.mxu0 0
    %315 = vmatprep.subr.bf16.mxu0 0
    %316 = vmatpush1.bf16.msra.mxu0 0
    %317 = vmatprep.mubr.bf16.mxu0 0
    %318 = vmatmul.mubr.bf16.gmra.mrb[0].mxu0 %v29
    %v319 = vpop.f32.mrb[0].mxu0
    %v320 = vadd.f32 %v75, %v319
    %v321 = vpop.f32.mrb[0].mxu0
    %v322 = vadd.f32 %v79, %v321
    %v323 = vpop.f32.mrb[0].mxu0
    %v324 = vpop.f32.mrb[0].mxu0
    %325 = vdwg.mxu0
    %v326 = vmax.f32 %v279, 0.0
    %v327 = vmax.f32 %v281, 0.0
    %v328 = vmax.f32 %v320, 0.0
    %v329 = vmax.f32 %v322, 0.0
    %v330 = vpack.c.bf16 %v326, %v326
    %v331 = vpack.c.bf16 %v327, %v327
    %v332 = vpack.c.bf16 %v328, %v328
    %v333 = vpack.c.bf16 %v329, %v329
    %v334 = vld [vmem:[%s3] sm:$0xff]
    %v335 = vld [vmem:[%s3 + $0x8] sm:$0xff]
    %v336 = vld [vmem:[%s3 + $0x10] sm:$0xff]
    %v337 = vld [vmem:[%s3 + $0x18] sm:$0xff]
    %v338 = vld [vmem:[%s3 + $0x20] sm:$0xff]
    %v339 = vld [vmem:[%s3 + $0x28] sm:$0xff]
    %v340 = vld [vmem:[%s3 + $0x30] sm:$0xff]
    %v341 = vld [vmem:[%s3 + $0x38] sm:$0xff]
    %v342 = vld [vmem:[%s3 + $0x40] sm:$0xff]
    %v343 = vld [vmem:[%s3 + $0x48] sm:$0xff]
    %v344 = vld [vmem:[%s3 + $0x50] sm:$0xff]
    %v345 = vld [vmem:[%s3 + $0x58] sm:$0xff]
    %v346 = vld [vmem:[%s3 + $0x60] sm:$0xff]
    %v347 = vld [vmem:[%s3 + $0x68] sm:$0xff]
    %v348 = vld [vmem:[%s3 + $0x70] sm:$0xff]
    %v349 = vld [vmem:[%s3 + $0x78] sm:$0xff]
    %v350 = vld [vmem:[%s3 + $0x80] sm:$0xff]
    %v351 = vld [vmem:[%s3 + $0x88] sm:$0xff]
    %v352 = vld [vmem:[%s3 + $0x90] sm:$0xff]
    %v353 = vld [vmem:[%s3 + $0x98] sm:$0xff]
    %v354 = vld [vmem:[%s3 + $0xa0] sm:$0xff]
    %v355 = vld [vmem:[%s3 + $0xa8] sm:$0xff]
    %v356 = vld [vmem:[%s3 + $0xb0] sm:$0xff]
    %v357 = vld [vmem:[%s3 + $0xb8] sm:$0xff]
    %v358 = vld [vmem:[%s3 + $0xc0] sm:$0xff]
    %v359 = vld [vmem:[%s3 + $0xc8] sm:$0xff]
    %v360 = vld [vmem:[%s3 + $0xd0] sm:$0xff]
    %v361 = vld [vmem:[%s3 + $0xd8] sm:$0xff]
    %v362 = vld [vmem:[%s3 + $0xe0] sm:$0xff]
    %v363 = vld [vmem:[%s3 + $0xe8] sm:$0xff]
    %v364 = vld [vmem:[%s3 + $0xf0] sm:$0xff]
    %v365 = vld [vmem:[%s3 + $0xf8] sm:$0xff]
    %v366 = vld [vmem:[%s3 + $0x100] sm:$0xff]
    %v367 = vld [vmem:[%s3 + $0x108] sm:$0xff]
    %v368 = vld [vmem:[%s3 + $0x110] sm:$0xff]
    %v369 = vld [vmem:[%s3 + $0x118] sm:$0xff]
    %v370 = vld [vmem:[%s3 + $0x120] sm:$0xff]
    %v371 = vld [vmem:[%s3 + $0x128] sm:$0xff]
    %v372 = vld [vmem:[%s3 + $0x130] sm:$0xff]
    %v373 = vld [vmem:[%s3 + $0x138] sm:$0xff]
    %v374 = vld [vmem:[%s3 + $0x140] sm:$0xff]
    %v375 = vld [vmem:[%s3 + $0x148] sm:$0xff]
    %v376 = vld [vmem:[%s3 + $0x150] sm:$0xff]
    %v377 = vld [vmem:[%s3 + $0x158] sm:$0xff]
    %v378 = vld [vmem:[%s3 + $0x160] sm:$0xff]
    %v379 = vld [vmem:[%s3 + $0x168] sm:$0xff]
    %v380 = vld [vmem:[%s3 + $0x170] sm:$0xff]
    %v381 = vld [vmem:[%s3 + $0x178] sm:$0xff]
    %v382 = vld [vmem:[%s3 + $0x180] sm:$0xff]
    %v383 = vld [vmem:[%s3 + $0x188] sm:$0xff]
    %v384 = vld [vmem:[%s3 + $0x190] sm:$0xff]
    %v385 = vld [vmem:[%s3 + $0x198] sm:$0xff]
    %v386 = vld [vmem:[%s3 + $0x1a0] sm:$0xff]
    %v387 = vld [vmem:[%s3 + $0x1a8] sm:$0xff]
    %v388 = vld [vmem:[%s3 + $0x1b0] sm:$0xff]
    %v389 = vld [vmem:[%s3 + $0x1b8] sm:$0xff]
    %v390 = vld [vmem:[%s3 + $0x1c0] sm:$0xff]
    %v391 = vld [vmem:[%s3 + $0x1c8] sm:$0xff]
    %v392 = vld [vmem:[%s3 + $0x1d0] sm:$0xff]
    %v393 = vld [vmem:[%s3 + $0x1d8] sm:$0xff]
    %v394 = vld [vmem:[%s3 + $0x1e0] sm:$0xff]
    %v395 = vld [vmem:[%s3 + $0x1e8] sm:$0xff]
    %v396 = vld [vmem:[%s3 + $0x1f0] sm:$0xff]
    %v397 = vld [vmem:[%s3 + $0x1f8] sm:$0xff]
    %v398 = vld [vmem:[%s4] sm:$0x3]
    %v400 = vlaneseq
    %v401 = vshrl.u32 %v400, 7
    %v402 = vsub.s32 0, %v401
    %v403 = vrot.slane %v398, %v402
    %v404 = vlaneseq
    %v405 = vshrl.u32 %v404, 7
    %v406 = vsub.s32 1, %v405
    %v407 = vrot.slane %v398, %v406
    %v474 = vunpack.c.l.b16 %v334
    %v475 = vunpack.c.h.b16 %v334
    %v476 = vunpack.c.l.b16 %v335
    %v477 = vunpack.c.h.b16 %v335
    %v478 = vunpack.c.l.b16 %v336
    %v479 = vunpack.c.h.b16 %v336
    %v480 = vunpack.c.l.b16 %v337
    %v481 = vunpack.c.h.b16 %v337
    %v482 = vunpack.c.l.b16 %v338
    %v483 = vunpack.c.h.b16 %v338
    %v484 = vunpack.c.l.b16 %v339
    %v485 = vunpack.c.h.b16 %v339
    %v486 = vunpack.c.l.b16 %v340
    %v487 = vunpack.c.h.b16 %v340
    %v488 = vunpack.c.l.b16 %v341
    %v489 = vunpack.c.h.b16 %v341
    %v490 = vunpack.c.l.b16 %v342
    %v491 = vunpack.c.h.b16 %v342
    %v492 = vunpack.c.l.b16 %v343
    %v493 = vunpack.c.h.b16 %v343
    %v494 = vunpack.c.l.b16 %v344
    %v495 = vunpack.c.h.b16 %v344
    %v496 = vunpack.c.l.b16 %v345
    %v497 = vunpack.c.h.b16 %v345
    %v498 = vunpack.c.l.b16 %v346
    %v499 = vunpack.c.h.b16 %v346
    %v500 = vunpack.c.l.b16 %v347
    %v501 = vunpack.c.h.b16 %v347
    %v502 = vunpack.c.l.b16 %v348
    %v503 = vunpack.c.h.b16 %v348
    %v504 = vunpack.c.l.b16 %v349
    %v505 = vunpack.c.h.b16 %v349
    %v506 = vunpack.c.l.b16 %v350
    %v507 = vunpack.c.h.b16 %v350
    %v508 = vunpack.c.l.b16 %v351
    %v509 = vunpack.c.h.b16 %v351
    %v510 = vunpack.c.l.b16 %v352
    %v511 = vunpack.c.h.b16 %v352
    %v512 = vunpack.c.l.b16 %v353
    %v513 = vunpack.c.h.b16 %v353
    %v514 = vunpack.c.l.b16 %v354
    %v515 = vunpack.c.h.b16 %v354
    %v516 = vunpack.c.l.b16 %v355
    %v517 = vunpack.c.h.b16 %v355
    %v518 = vunpack.c.l.b16 %v356
    %v519 = vunpack.c.h.b16 %v356
    %v520 = vunpack.c.l.b16 %v357
    %v521 = vunpack.c.h.b16 %v357
    %v522 = vunpack.c.l.b16 %v358
    %v523 = vunpack.c.h.b16 %v358
    %v524 = vunpack.c.l.b16 %v359
    %v525 = vunpack.c.h.b16 %v359
    %v526 = vunpack.c.l.b16 %v360
    %v527 = vunpack.c.h.b16 %v360
    %v528 = vunpack.c.l.b16 %v361
    %v529 = vunpack.c.h.b16 %v361
    %v530 = vunpack.c.l.b16 %v362
    %v531 = vunpack.c.h.b16 %v362
    %v532 = vunpack.c.l.b16 %v363
    %v533 = vunpack.c.h.b16 %v363
    %v534 = vunpack.c.l.b16 %v364
    %v535 = vunpack.c.h.b16 %v364
    %v536 = vunpack.c.l.b16 %v365
    %v537 = vunpack.c.h.b16 %v365
    %v538 = vunpack.c.l.b16 %v366
    %v539 = vunpack.c.h.b16 %v366
    %v540 = vunpack.c.l.b16 %v367
    %v541 = vunpack.c.h.b16 %v367
    %v542 = vunpack.c.l.b16 %v368
    %v543 = vunpack.c.h.b16 %v368
    %v544 = vunpack.c.l.b16 %v369
    %v545 = vunpack.c.h.b16 %v369
    %v546 = vunpack.c.l.b16 %v370
    %v547 = vunpack.c.h.b16 %v370
    %v548 = vunpack.c.l.b16 %v371
    %v549 = vunpack.c.h.b16 %v371
    %v550 = vunpack.c.l.b16 %v372
    %v551 = vunpack.c.h.b16 %v372
    %v552 = vunpack.c.l.b16 %v373
    %v553 = vunpack.c.h.b16 %v373
    %v554 = vunpack.c.l.b16 %v374
    %v555 = vunpack.c.h.b16 %v374
    %v556 = vunpack.c.l.b16 %v375
    %v557 = vunpack.c.h.b16 %v375
    %v558 = vunpack.c.l.b16 %v376
    %v559 = vunpack.c.h.b16 %v376
    %v560 = vunpack.c.l.b16 %v377
    %v561 = vunpack.c.h.b16 %v377
    %v562 = vunpack.c.l.b16 %v378
    %v563 = vunpack.c.h.b16 %v378
    %v564 = vunpack.c.l.b16 %v379
    %v565 = vunpack.c.h.b16 %v379
    %v566 = vunpack.c.l.b16 %v380
    %v567 = vunpack.c.h.b16 %v380
    %v568 = vunpack.c.l.b16 %v381
    %v569 = vunpack.c.h.b16 %v381
    %v570 = vunpack.c.l.b16 %v382
    %v571 = vunpack.c.h.b16 %v382
    %v572 = vunpack.c.l.b16 %v383
    %v573 = vunpack.c.h.b16 %v383
    %v574 = vunpack.c.l.b16 %v384
    %v575 = vunpack.c.h.b16 %v384
    %v576 = vunpack.c.l.b16 %v385
    %v577 = vunpack.c.h.b16 %v385
    %v578 = vunpack.c.l.b16 %v386
    %v579 = vunpack.c.h.b16 %v386
    %v580 = vunpack.c.l.b16 %v387
    %v581 = vunpack.c.h.b16 %v387
    %v582 = vunpack.c.l.b16 %v388
    %v583 = vunpack.c.h.b16 %v388
    %v584 = vunpack.c.l.b16 %v389
    %v585 = vunpack.c.h.b16 %v389
    %v586 = vunpack.c.l.b16 %v390
    %v587 = vunpack.c.h.b16 %v390
    %v588 = vunpack.c.l.b16 %v391
    %v589 = vunpack.c.h.b16 %v391
    %v590 = vunpack.c.l.b16 %v392
    %v591 = vunpack.c.h.b16 %v392
    %v592 = vunpack.c.l.b16 %v393
    %v593 = vunpack.c.h.b16 %v393
    %v594 = vunpack.c.l.b16 %v394
    %v595 = vunpack.c.h.b16 %v394
    %v596 = vunpack.c.l.b16 %v395
    %v597 = vunpack.c.h.b16 %v395
    %v598 = vunpack.c.l.b16 %v396
    %v599 = vunpack.c.h.b16 %v396
    %v600 = vunpack.c.l.b16 %v397
    %v601 = vunpack.c.h.b16 %v397
    %v602 = vpack.c.b16 %v476, %v474
    %v603 = vpack.c.b16 %v477, %v475
    %v604 = vpack.c.b16 %v480, %v478
    %v605 = vpack.c.b16 %v481, %v479
    %v606 = vpack.c.b16 %v484, %v482
    %v607 = vpack.c.b16 %v485, %v483
    %v608 = vpack.c.b16 %v488, %v486
    %v609 = vpack.c.b16 %v489, %v487
    %v610 = vpack.c.b16 %v492, %v490
    %v611 = vpack.c.b16 %v493, %v491
    %v612 = vpack.c.b16 %v496, %v494
    %v613 = vpack.c.b16 %v497, %v495
    %v614 = vpack.c.b16 %v500, %v498
    %v615 = vpack.c.b16 %v501, %v499
    %v616 = vpack.c.b16 %v504, %v502
    %v617 = vpack.c.b16 %v505, %v503
    %v618 = vpack.c.b16 %v508, %v506
    %v619 = vpack.c.b16 %v509, %v507
    %v620 = vpack.c.b16 %v512, %v510
    %v621 = vpack.c.b16 %v513, %v511
    %v622 = vpack.c.b16 %v516, %v514
    %v623 = vpack.c.b16 %v517, %v515
    %v624 = vpack.c.b16 %v520, %v518
    %v625 = vpack.c.b16 %v521, %v519
    %v626 = vpack.c.b16 %v524, %v522
    %v627 = vpack.c.b16 %v525, %v523
    %v628 = vpack.c.b16 %v528, %v526
    %v629 = vpack.c.b16 %v529, %v527
    %v630 = vpack.c.b16 %v532, %v530
    %v631 = vpack.c.b16 %v533, %v531
    %v632 = vpack.c.b16 %v536, %v534
    %v633 = vpack.c.b16 %v537, %v535
    %v634 = vpack.c.b16 %v540, %v538
    %v635 = vpack.c.b16 %v541, %v539
    %v636 = vpack.c.b16 %v544, %v542
    %v637 = vpack.c.b16 %v545, %v543
    %v638 = vpack.c.b16 %v548, %v546
    %v639 = vpack.c.b16 %v549, %v547
    %v640 = vpack.c.b16 %v552, %v550
    %v641 = vpack.c.b16 %v553, %v551
    %v642 = vpack.c.b16 %v556, %v554
    %v643 = vpack.c.b16 %v557, %v555
    %v644 = vpack.c.b16 %v560, %v558
    %v645 = vpack.c.b16 %v561, %v559
    %v646 = vpack.c.b16 %v564, %v562
    %v647 = vpack.c.b16 %v565, %v563
    %v648 = vpack.c.b16 %v568, %v566
    %v649 = vpack.c.b16 %v569, %v567
    %v650 = vpack.c.b16 %v572, %v570
    %v651 = vpack.c.b16 %v573, %v571
    %v652 = vpack.c.b16 %v576, %v574
    %v653 = vpack.c.b16 %v577, %v575
    %v654 = vpack.c.b16 %v580, %v578
    %v655 = vpack.c.b16 %v581, %v579
    %v656 = vpack.c.b16 %v584, %v582
    %v657 = vpack.c.b16 %v585, %v583
    %v658 = vpack.c.b16 %v588, %v586
    %v659 = vpack.c.b16 %v589, %v587
    %v660 = vpack.c.b16 %v592, %v590
    %v661 = vpack.c.b16 %v593, %v591
    %v662 = vpack.c.b16 %v596, %v594
    %v663 = vpack.c.b16 %v597, %v595
    %v664 = vpack.c.b16 %v600, %v598
    %v665 = vpack.c.b16 %v601, %v599
    %730 = vmatprep.subr.bf16.mxu0 %v603
    %731 = vmatpush1.bf16.msra.mxu0 %v602
    %732 = vmatprep.subr.bf16.mxu0 %v605
    %733 = vmatpush1.bf16.msra.mxu0 %v604
    %734 = vmatprep.subr.bf16.mxu0 %v607
    %735 = vmatpush1.bf16.msra.mxu0 %v606
    %736 = vmatprep.subr.bf16.mxu0 %v609
    %737 = vmatpush1.bf16.msra.mxu0 %v608
    %738 = vmatprep.subr.bf16.mxu0 %v611
    %739 = vmatpush1.bf16.msra.mxu0 %v610
    %740 = vmatprep.subr.bf16.mxu0 %v613
    %741 = vmatpush1.bf16.msra.mxu0 %v612
    %742 = vmatprep.subr.bf16.mxu0 %v615
    %743 = vmatpush1.bf16.msra.mxu0 %v614
    %744 = vmatprep.subr.bf16.mxu0 %v617
    %745 = vmatpush1.bf16.msra.mxu0 %v616
    %746 = vmatprep.subr.bf16.mxu0 %v619
    %747 = vmatpush1.bf16.msra.mxu0 %v618
    %748 = vmatprep.subr.bf16.mxu0 %v621
    %749 = vmatpush1.bf16.msra.mxu0 %v620
    %750 = vmatprep.subr.bf16.mxu0 %v623
    %751 = vmatpush1.bf16.msra.mxu0 %v622
    %752 = vmatprep.subr.bf16.mxu0 %v625
    %753 = vmatpush1.bf16.msra.mxu0 %v624
    %754 = vmatprep.subr.bf16.mxu0 %v627
    %755 = vmatpush1.bf16.msra.mxu0 %v626
    %756 = vmatprep.subr.bf16.mxu0 %v629
    %757 = vmatpush1.bf16.msra.mxu0 %v628
    %758 = vmatprep.subr.bf16.mxu0 %v631
    %759 = vmatpush1.bf16.msra.mxu0 %v630
    %760 = vmatprep.subr.bf16.mxu0 %v633
    %761 = vmatpush1.bf16.msra.mxu0 %v632
    %762 = vmatprep.mubr.bf16.mxu0 %v331
    %763 = vmatmul.mubr.bf16.gmra.mrb[0].mxu0 %v330
    %v764 = vpop.f32.mrb[0].mxu0
    %v765 = vadd.f32 %v403, %v764
    %v766 = vpop.f32.mrb[0].mxu0
    %v767 = vadd.f32 %v407, %v766
    %v768 = vpop.f32.mrb[0].mxu0
    %v769 = vpop.f32.mrb[0].mxu0
    %770 = vdwg.mxu0
    %771 = vmatprep.subr.bf16.mxu0 %v635
    %772 = vmatpush1.bf16.msra.mxu0 %v634
    %773 = vmatprep.subr.bf16.mxu0 %v637
    %774 = vmatpush1.bf16.msra.mxu0 %v636
    %775 = vmatprep.subr.bf16.mxu0 %v639
    %776 = vmatpush1.bf16.msra.mxu0 %v638
    %777 = vmatprep.subr.bf16.mxu0 %v641
    %778 = vmatpush1.bf16.msra.mxu0 %v640
    %779 = vmatprep.subr.bf16.mxu0 %v643
    %780 = vmatpush1.bf16.msra.mxu0 %v642
    %781 = vmatprep.subr.bf16.mxu0 %v645
    %782 = vmatpush1.bf16.msra.mxu0 %v644
    %783 = vmatprep.subr.bf16.mxu0 %v647
    %784 = vmatpush1.bf16.msra.mxu0 %v646
    %785 = vmatprep.subr.bf16.mxu0 %v649
    %786 = vmatpush1.bf16.msra.mxu0 %v648
    %787 = vmatprep.subr.bf16.mxu0 %v651
    %788 = vmatpush1.bf16.msra.mxu0 %v650
    %789 = vmatprep.subr.bf16.mxu0 %v653
    %790 = vmatpush1.bf16.msra.mxu0 %v652
    %791 = vmatprep.subr.bf16.mxu0 %v655
    %792 = vmatpush1.bf16.msra.mxu0 %v654
    %793 = vmatprep.subr.bf16.mxu0 %v657
    %794 = vmatpush1.bf16.msra.mxu0 %v656
    %795 = vmatprep.subr.bf16.mxu0 %v659
    %796 = vmatpush1.bf16.msra.mxu0 %v658
    %797 = vmatprep.subr.bf16.mxu0 %v661
    %798 = vmatpush1.bf16.msra.mxu0 %v660
    %799 = vmatprep.subr.bf16.mxu0 %v663
    %800 = vmatpush1.bf16.msra.mxu0 %v662
    %801 = vmatprep.subr.bf16.mxu0 %v665
    %802 = vmatpush1.bf16.msra.mxu0 %v664
    %803 = vmatprep.mubr.bf16.mxu0 %v333
    %804 = vmatmul.mubr.bf16.gmra.mrb[0].mxu0 %v332
    %v805 = vpop.f32.mrb[0].mxu0
    %v806 = vadd.f32 %v765, %v805
    %v807 = vpop.f32.mrb[0].mxu0
    %v808 = vadd.f32 %v767, %v807
    %v809 = vpop.f32.mrb[0].mxu0
    %v810 = vpop.f32.mrb[0].mxu0
    %811 = vdwg.mxu0
    %v812 = vmax.f32 %v806, 0.0
    %v813 = vmax.f32 %v808, 0.0
    %v814 = vpack.c.bf16 %v812, %v812
    %v815 = vpack.c.bf16 %v813, %v813
    %v816 = vld [vmem:[%s5] sm:$0xff]
    %v817 = vld [vmem:[%s5 + $0x8] sm:$0xff]
    %v818 = vld [vmem:[%s5 + $0x10] sm:$0xff]
    %v819 = vld [vmem:[%s5 + $0x18] sm:$0xf]
    %v820 = vld [vmem:[%s5 + $0x1c] sm:$0xff]
    %v821 = vld [vmem:[%s5 + $0x24] sm:$0xff]
    %v822 = vld [vmem:[%s5 + $0x2c] sm:$0xff]
    %v823 = vld [vmem:[%s5 + $0x34] sm:$0xf]
    %v824 = vld [vmem:[%s5 + $0x38] sm:$0xff]
    %v825 = vld [vmem:[%s5 + $0x40] sm:$0xff]
    %v826 = vld [vmem:[%s5 + $0x48] sm:$0xff]
    %v827 = vld [vmem:[%s5 + $0x50] sm:$0xf]
    %v828 = vld [vmem:[%s5 + $0x54] sm:$0xff]
    %v829 = vld [vmem:[%s5 + $0x5c] sm:$0xff]
    %v830 = vld [vmem:[%s5 + $0x64] sm:$0xff]
    %v831 = vld [vmem:[%s5 + $0x6c] sm:$0xf]
    %v832 = vld [vmem:[%s5 + $0x70] sm:$0xff]
    %v833 = vld [vmem:[%s5 + $0x78] sm:$0xff]
    %v834 = vld [vmem:[%s5 + $0x80] sm:$0xff]
    %v835 = vld [vmem:[%s5 + $0x88] sm:$0xf]
    %v836 = vld [vmem:[%s5 + $0x8c] sm:$0xff]
    %v837 = vld [vmem:[%s5 + $0x94] sm:$0xff]
    %v838 = vld [vmem:[%s5 + $0x9c] sm:$0xff]
    %v839 = vld [vmem:[%s5 + $0xa4] sm:$0xf]
    %v840 = vld [vmem:[%s5 + $0xa8] sm:$0xff]
    %v841 = vld [vmem:[%s5 + $0xb0] sm:$0xff]
    %v842 = vld [vmem:[%s5 + $0xb8] sm:$0xff]
    %v843 = vld [vmem:[%s5 + $0xc0] sm:$0xf]
    %v844 = vld [vmem:[%s5 + $0xc4] sm:$0xff]
    %v845 = vld [vmem:[%s5 + $0xcc] sm:$0xff]
    %v846 = vld [vmem:[%s5 + $0xd4] sm:$0xff]
    %v847 = vld [vmem:[%s5 + $0xdc] sm:$0xf]
    %v848 = vld [vmem:[%s5 + $0xe0] sm:$0xff]
    %v849 = vld [vmem:[%s5 + $0xe8] sm:$0xff]
    %v850 = vld [vmem:[%s5 + $0xf0] sm:$0xff]
    %v851 = vld [vmem:[%s5 + $0xf8] sm:$0xf]
    %v852 = vld [vmem:[%s5 + $0xfc] sm:$0xff]
    %v853 = vld [vmem:[%s5 + $0x104] sm:$0xff]
    %v854 = vld [vmem:[%s5 + $0x10c] sm:$0xff]
    %v855 = vld [vmem:[%s5 + $0x114] sm:$0xf]
    %v856 = vld [vmem:[%s5 + $0x118] sm:$0xff]
    %v857 = vld [vmem:[%s5 + $0x120] sm:$0xff]
    %v858 = vld [vmem:[%s5 + $0x128] sm:$0xff]
    %v859 = vld [vmem:[%s5 + $0x130] sm:$0xf]
    %v860 = vld [vmem:[%s5 + $0x134] sm:$0xff]
    %v861 = vld [vmem:[%s5 + $0x13c] sm:$0xff]
    %v862 = vld [vmem:[%s5 + $0x144] sm:$0xff]
    %v863 = vld [vmem:[%s5 + $0x14c] sm:$0xf]
    %v864 = vld [vmem:[%s5 + $0x150] sm:$0xff]
    %v865 = vld [vmem:[%s5 + $0x158] sm:$0xff]
    %v866 = vld [vmem:[%s5 + $0x160] sm:$0xff]
    %v867 = vld [vmem:[%s5 + $0x168] sm:$0xf]
    %v868 = vld [vmem:[%s5 + $0x16c] sm:$0xff]
    %v869 = vld [vmem:[%s5 + $0x174] sm:$0xff]
    %v870 = vld [vmem:[%s5 + $0x17c] sm:$0xff]
    %v871 = vld [vmem:[%s5 + $0x184] sm:$0xf]
    %v872 = vld [vmem:[%s5 + $0x188] sm:$0xff]
    %v873 = vld [vmem:[%s5 + $0x190] sm:$0xff]
    %v874 = vld [vmem:[%s5 + $0x198] sm:$0xff]
    %v875 = vld [vmem:[%s5 + $0x1a0] sm:$0xf]
    %v876 = vld [vmem:[%s5 + $0x1a4] sm:$0xff]
    %v877 = vld [vmem:[%s5 + $0x1ac] sm:$0xff]
    %v878 = vld [vmem:[%s5 + $0x1b4] sm:$0xff]
    %v879 = vld [vmem:[%s5 + $0x1bc] sm:$0xf]
    %v880 = vld [vmem:[%s5 + $0x1c0] sm:$0xff]
    %v881 = vld [vmem:[%s5 + $0x1c8] sm:$0xff]
    %v882 = vld [vmem:[%s5 + $0x1d0] sm:$0xff]
    %v883 = vld [vmem:[%s5 + $0x1d8] sm:$0xf]
    %v884 = vld [vmem:[%s5 + $0x1dc] sm:$0xff]
    %v885 = vld [vmem:[%s5 + $0x1e4] sm:$0xff]
    %v886 = vld [vmem:[%s5 + $0x1ec] sm:$0xff]
    %v887 = vld [vmem:[%s5 + $0x1f4] sm:$0xf]
    %v888 = vld [vmem:[%s5 + $0x1f8] sm:$0xff]
    %v889 = vld [vmem:[%s5 + $0x200] sm:$0xff]
    %v890 = vld [vmem:[%s5 + $0x208] sm:$0xff]
    %v891 = vld [vmem:[%s5 + $0x210] sm:$0xf]
    %v892 = vld [vmem:[%s5 + $0x214] sm:$0xff]
    %v893 = vld [vmem:[%s5 + $0x21c] sm:$0xff]
    %v894 = vld [vmem:[%s5 + $0x224] sm:$0xff]
    %v895 = vld [vmem:[%s5 + $0x22c] sm:$0xf]
    %v896 = vld [vmem:[%s5 + $0x230] sm:$0xff]
    %v897 = vld [vmem:[%s5 + $0x238] sm:$0xff]
    %v898 = vld [vmem:[%s5 + $0x240] sm:$0xff]
    %v899 = vld [vmem:[%s5 + $0x248] sm:$0xf]
    %v900 = vld [vmem:[%s5 + $0x24c] sm:$0xff]
    %v901 = vld [vmem:[%s5 + $0x254] sm:$0xff]
    %v902 = vld [vmem:[%s5 + $0x25c] sm:$0xff]
    %v903 = vld [vmem:[%s5 + $0x264] sm:$0xf]
    %v904 = vld [vmem:[%s5 + $0x268] sm:$0xff]
    %v905 = vld [vmem:[%s5 + $0x270] sm:$0xff]
    %v906 = vld [vmem:[%s5 + $0x278] sm:$0xff]
    %v907 = vld [vmem:[%s5 + $0x280] sm:$0xf]
    %v908 = vld [vmem:[%s5 + $0x284] sm:$0xff]
    %v909 = vld [vmem:[%s5 + $0x28c] sm:$0xff]
    %v910 = vld [vmem:[%s5 + $0x294] sm:$0xff]
    %v911 = vld [vmem:[%s5 + $0x29c] sm:$0xf]
    %v912 = vld [vmem:[%s5 + $0x2a0] sm:$0xff]
    %v913 = vld [vmem:[%s5 + $0x2a8] sm:$0xff]
    %v914 = vld [vmem:[%s5 + $0x2b0] sm:$0xff]
    %v915 = vld [vmem:[%s5 + $0x2b8] sm:$0xf]
    %v916 = vld [vmem:[%s5 + $0x2bc] sm:$0xff]
    %v917 = vld [vmem:[%s5 + $0x2c4] sm:$0xff]
    %v918 = vld [vmem:[%s5 + $0x2cc] sm:$0xff]
    %v919 = vld [vmem:[%s5 + $0x2d4] sm:$0xf]
    %v920 = vld [vmem:[%s5 + $0x2d8] sm:$0xff]
    %v921 = vld [vmem:[%s5 + $0x2e0] sm:$0xff]
    %v922 = vld [vmem:[%s5 + $0x2e8] sm:$0xff]
    %v923 = vld [vmem:[%s5 + $0x2f0] sm:$0xf]
    %v924 = vld [vmem:[%s5 + $0x2f4] sm:$0xff]
    %v925 = vld [vmem:[%s5 + $0x2fc] sm:$0xff]
    %v926 = vld [vmem:[%s5 + $0x304] sm:$0xff]
    %v927 = vld [vmem:[%s5 + $0x30c] sm:$0xf]
    %v928 = vld [vmem:[%s5 + $0x310] sm:$0xff]
    %v929 = vld [vmem:[%s5 + $0x318] sm:$0xff]
    %v930 = vld [vmem:[%s5 + $0x320] sm:$0xff]
    %v931 = vld [vmem:[%s5 + $0x328] sm:$0xf]
    %v932 = vld [vmem:[%s5 + $0x32c] sm:$0xff]
    %v933 = vld [vmem:[%s5 + $0x334] sm:$0xff]
    %v934 = vld [vmem:[%s5 + $0x33c] sm:$0xff]
    %v935 = vld [vmem:[%s5 + $0x344] sm:$0xf]
    %v936 = vld [vmem:[%s5 + $0x348] sm:$0xff]
    %v937 = vld [vmem:[%s5 + $0x350] sm:$0xff]
    %v938 = vld [vmem:[%s5 + $0x358] sm:$0xff]
    %v939 = vld [vmem:[%s5 + $0x360] sm:$0xf]
    %v940 = vld [vmem:[%s5 + $0x364] sm:$0xff]
    %v941 = vld [vmem:[%s5 + $0x36c] sm:$0xff]
    %v942 = vld [vmem:[%s5 + $0x374] sm:$0xff]
    %v943 = vld [vmem:[%s5 + $0x37c] sm:$0xf]
    %v944 = vld [vmem:[%s6] sm:$0x7f]
    %v946 = vlaneseq
    %v947 = vshrl.u32 %v946, 7
    %v948 = vsub.s32 0, %v947
    %v949 = vrot.slane %v944, %v948
    %v950 = vlaneseq
    %v951 = vshrl.u32 %v950, 7
    %v952 = vsub.s32 1, %v951
    %v953 = vrot.slane %v944, %v952
    %v954 = vlaneseq
    %v955 = vshrl.u32 %v954, 7
    %v956 = vsub.s32 2, %v955
    %v957 = vrot.slane %v944, %v956
    %v958 = vlaneseq
    %v959 = vshrl.u32 %v958, 7
    %v960 = vsub.s32 3, %v959
    %v961 = vrot.slane %v944, %v960
    %v962 = vlaneseq
    %v963 = vshrl.u32 %v962, 7
    %v964 = vsub.s32 4, %v963
    %v965 = vrot.slane %v944, %v964
    %v966 = vlaneseq
    %v967 = vshrl.u32 %v966, 7
    %v968 = vsub.s32 5, %v967
    %v969 = vrot.slane %v944, %v968
    %v970 = vlaneseq
    %v971 = vshrl.u32 %v970, 7
    %v972 = vsub.s32 6, %v971
    %v973 = vrot.slane %v944, %v972
    %v1109 = vunpack.c.l.b16 %v816
    %v1110 = vunpack.c.h.b16 %v816
    %v1111 = vunpack.c.l.b16 %v817
    %v1112 = vunpack.c.h.b16 %v817
    %v1113 = vunpack.c.l.b16 %v818
    %v1114 = vunpack.c.h.b16 %v818
    %v1115 = vunpack.c.l.b16 %v819
    %v1116 = vunpack.c.l.b16 %v820
    %v1117 = vunpack.c.h.b16 %v820
    %v1118 = vunpack.c.l.b16 %v821
    %v1119 = vunpack.c.h.b16 %v821
    %v1120 = vunpack.c.l.b16 %v822
    %v1121 = vunpack.c.h.b16 %v822
    %v1122 = vunpack.c.l.b16 %v823
    %v1123 = vunpack.c.l.b16 %v824
    %v1124 = vunpack.c.h.b16 %v824
    %v1125 = vunpack.c.l.b16 %v825
    %v1126 = vunpack.c.h.b16 %v825
    %v1127 = vunpack.c.l.b16 %v826
    %v1128 = vunpack.c.h.b16 %v826
    %v1129 = vunpack.c.l.b16 %v827
    %v1130 = vunpack.c.l.b16 %v828
    %v1131 = vunpack.c.h.b16 %v828
    %v1132 = vunpack.c.l.b16 %v829
    %v1133 = vunpack.c.h.b16 %v829
    %v1134 = vunpack.c.l.b16 %v830
    %v1135 = vunpack.c.h.b16 %v830
    %v1136 = vunpack.c.l.b16 %v831
    %v1137 = vunpack.c.l.b16 %v832
    %v1138 = vunpack.c.h.b16 %v832
    %v1139 = vunpack.c.l.b16 %v833
    %v1140 = vunpack.c.h.b16 %v833
    %v1141 = vunpack.c.l.b16 %v834
    %v1142 = vunpack.c.h.b16 %v834
    %v1143 = vunpack.c.l.b16 %v835
    %v1144 = vunpack.c.l.b16 %v836
    %v1145 = vunpack.c.h.b16 %v836
    %v1146 = vunpack.c.l.b16 %v837
    %v1147 = vunpack.c.h.b16 %v837
    %v1148 = vunpack.c.l.b16 %v838
    %v1149 = vunpack.c.h.b16 %v838
    %v1150 = vunpack.c.l.b16 %v839
    %v1151 = vunpack.c.l.b16 %v840
    %v1152 = vunpack.c.h.b16 %v840
    %v1153 = vunpack.c.l.b16 %v841
    %v1154 = vunpack.c.h.b16 %v841
    %v1155 = vunpack.c.l.b16 %v842
    %v1156 = vunpack.c.h.b16 %v842
    %v1157 = vunpack.c.l.b16 %v843
    %v1158 = vunpack.c.l.b16 %v844
    %v1159 = vunpack.c.h.b16 %v844
    %v1160 = vunpack.c.l.b16 %v845
    %v1161 = vunpack.c.h.b16 %v845
    %v1162 = vunpack.c.l.b16 %v846
    %v1163 = vunpack.c.h.b16 %v846
    %v1164 = vunpack.c.l.b16 %v847
    %v1165 = vunpack.c.l.b16 %v848
    %v1166 = vunpack.c.h.b16 %v848
    %v1167 = vunpack.c.l.b16 %v849
    %v1168 = vunpack.c.h.b16 %v849
    %v1169 = vunpack.c.l.b16 %v850
    %v1170 = vunpack.c.h.b16 %v850
    %v1171 = vunpack.c.l.b16 %v851
    %v1172 = vunpack.c.l.b16 %v852
    %v1173 = vunpack.c.h.b16 %v852
    %v1174 = vunpack.c.l.b16 %v853
    %v1175 = vunpack.c.h.b16 %v853
    %v1176 = vunpack.c.l.b16 %v854
    %v1177 = vunpack.c.h.b16 %v854
    %v1178 = vunpack.c.l.b16 %v855
    %v1179 = vunpack.c.l.b16 %v856
    %v1180 = vunpack.c.h.b16 %v856
    %v1181 = vunpack.c.l.b16 %v857
    %v1182 = vunpack.c.h.b16 %v857
    %v1183 = vunpack.c.l.b16 %v858
    %v1184 = vunpack.c.h.b16 %v858
    %v1185 = vunpack.c.l.b16 %v859
    %v1186 = vunpack.c.l.b16 %v860
    %v1187 = vunpack.c.h.b16 %v860
    %v1188 = vunpack.c.l.b16 %v861
    %v1189 = vunpack.c.h.b16 %v861
    %v1190 = vunpack.c.l.b16 %v862
    %v1191 = vunpack.c.h.b16 %v862
    %v1192 = vunpack.c.l.b16 %v863
    %v1193 = vunpack.c.l.b16 %v864
    %v1194 = vunpack.c.h.b16 %v864
    %v1195 = vunpack.c.l.b16 %v865
    %v1196 = vunpack.c.h.b16 %v865
    %v1197 = vunpack.c.l.b16 %v866
    %v1198 = vunpack.c.h.b16 %v866
    %v1199 = vunpack.c.l.b16 %v867
    %v1200 = vunpack.c.l.b16 %v868
    %v1201 = vunpack.c.h.b16 %v868
    %v1202 = vunpack.c.l.b16 %v869
    %v1203 = vunpack.c.h.b16 %v869
    %v1204 = vunpack.c.l.b16 %v870
    %v1205 = vunpack.c.h.b16 %v870
    %v1206 = vunpack.c.l.b16 %v871
    %v1207 = vunpack.c.l.b16 %v872
    %v1208 = vunpack.c.h.b16 %v872
    %v1209 = vunpack.c.l.b16 %v873
    %v1210 = vunpack.c.h.b16 %v873
    %v1211 = vunpack.c.l.b16 %v874
    %v1212 = vunpack.c.h.b16 %v874
    %v1213 = vunpack.c.l.b16 %v875
    %v1214 = vunpack.c.l.b16 %v876
    %v1215 = vunpack.c.h.b16 %v876
    %v1216 = vunpack.c.l.b16 %v877
    %v1217 = vunpack.c.h.b16 %v877
    %v1218 = vunpack.c.l.b16 %v878
    %v1219 = vunpack.c.h.b16 %v878
    %v1220 = vunpack.c.l.b16 %v879
    %v1221 = vunpack.c.l.b16 %v880
    %v1222 = vunpack.c.h.b16 %v880
    %v1223 = vunpack.c.l.b16 %v881
    %v1224 = vunpack.c.h.b16 %v881
    %v1225 = vunpack.c.l.b16 %v882
    %v1226 = vunpack.c.h.b16 %v882
    %v1227 = vunpack.c.l.b16 %v883
    %v1228 = vunpack.c.l.b16 %v884
    %v1229 = vunpack.c.h.b16 %v884
    %v1230 = vunpack.c.l.b16 %v885
    %v1231 = vunpack.c.h.b16 %v885
    %v1232 = vunpack.c.l.b16 %v886
    %v1233 = vunpack.c.h.b16 %v886
    %v1234 = vunpack.c.l.b16 %v887
    %v1235 = vunpack.c.l.b16 %v888
    %v1236 = vunpack.c.h.b16 %v888
    %v1237 = vunpack.c.l.b16 %v889
    %v1238 = vunpack.c.h.b16 %v889
    %v1239 = vunpack.c.l.b16 %v890
    %v1240 = vunpack.c.h.b16 %v890
    %v1241 = vunpack.c.l.b16 %v891
    %v1242 = vunpack.c.l.b16 %v892
    %v1243 = vunpack.c.h.b16 %v892
    %v1244 = vunpack.c.l.b16 %v893
    %v1245 = vunpack.c.h.b16 %v893
    %v1246 = vunpack.c.l.b16 %v894
    %v1247 = vunpack.c.h.b16 %v894
    %v1248 = vunpack.c.l.b16 %v895
    %v1249 = vunpack.c.l.b16 %v896
    %v1250 = vunpack.c.h.b16 %v896
    %v1251 = vunpack.c.l.b16 %v897
    %v1252 = vunpack.c.h.b16 %v897
    %v1253 = vunpack.c.l.b16 %v898
    %v1254 = vunpack.c.h.b16 %v898
    %v1255 = vunpack.c.l.b16 %v899
    %v1256 = vunpack.c.l.b16 %v900
    %v1257 = vunpack.c.h.b16 %v900
    %v1258 = vunpack.c.l.b16 %v901
    %v1259 = vunpack.c.h.b16 %v901
    %v1260 = vunpack.c.l.b16 %v902
    %v1261 = vunpack.c.h.b16 %v902
    %v1262 = vunpack.c.l.b16 %v903
    %v1263 = vunpack.c.l.b16 %v904
    %v1264 = vunpack.c.h.b16 %v904
    %v1265 = vunpack.c.l.b16 %v905
    %v1266 = vunpack.c.h.b16 %v905
    %v1267 = vunpack.c.l.b16 %v906
    %v1268 = vunpack.c.h.b16 %v906
    %v1269 = vunpack.c.l.b16 %v907
    %v1270 = vunpack.c.l.b16 %v908
    %v1271 = vunpack.c.h.b16 %v908
    %v1272 = vunpack.c.l.b16 %v909
    %v1273 = vunpack.c.h.b16 %v909
    %v1274 = vunpack.c.l.b16 %v910
    %v1275 = vunpack.c.h.b16 %v910
    %v1276 = vunpack.c.l.b16 %v911
    %v1277 = vunpack.c.l.b16 %v912
    %v1278 = vunpack.c.h.b16 %v912
    %v1279 = vunpack.c.l.b16 %v913
    %v1280 = vunpack.c.h.b16 %v913
    %v1281 = vunpack.c.l.b16 %v914
    %v1282 = vunpack.c.h.b16 %v914
    %v1283 = vunpack.c.l.b16 %v915
    %v1284 = vunpack.c.l.b16 %v916
    %v1285 = vunpack.c.h.b16 %v916
    %v1286 = vunpack.c.l.b16 %v917
    %v1287 = vunpack.c.h.b16 %v917
    %v1288 = vunpack.c.l.b16 %v918
    %v1289 = vunpack.c.h.b16 %v918
    %v1290 = vunpack.c.l.b16 %v919
    %v1291 = vunpack.c.l.b16 %v920
    %v1292 = vunpack.c.h.b16 %v920
    %v1293 = vunpack.c.l.b16 %v921
    %v1294 = vunpack.c.h.b16 %v921
    %v1295 = vunpack.c.l.b16 %v922
    %v1296 = vunpack.c.h.b16 %v922
    %v1297 = vunpack.c.l.b16 %v923
    %v1298 = vunpack.c.l.b16 %v924
    %v1299 = vunpack.c.h.b16 %v924
    %v1300 = vunpack.c.l.b16 %v925
    %v1301 = vunpack.c.h.b16 %v925
    %v1302 = vunpack.c.l.b16 %v926
    %v1303 = vunpack.c.h.b16 %v926
    %v1304 = vunpack.c.l.b16 %v927
    %v1305 = vunpack.c.l.b16 %v928
    %v1306 = vunpack.c.h.b16 %v928
    %v1307 = vunpack.c.l.b16 %v929
    %v1308 = vunpack.c.h.b16 %v929
    %v1309 = vunpack.c.l.b16 %v930
    %v1310 = vunpack.c.h.b16 %v930
    %v1311 = vunpack.c.l.b16 %v931
    %v1312 = vunpack.c.l.b16 %v932
    %v1313 = vunpack.c.h.b16 %v932
    %v1314 = vunpack.c.l.b16 %v933
    %v1315 = vunpack.c.h.b16 %v933
    %v1316 = vunpack.c.l.b16 %v934
    %v1317 = vunpack.c.h.b16 %v934
    %v1318 = vunpack.c.l.b16 %v935
    %v1319 = vunpack.c.l.b16 %v936
    %v1320 = vunpack.c.h.b16 %v936
    %v1321 = vunpack.c.l.b16 %v937
    %v1322 = vunpack.c.h.b16 %v937
    %v1323 = vunpack.c.l.b16 %v938
    %v1324 = vunpack.c.h.b16 %v938
    %v1325 = vunpack.c.l.b16 %v939
    %v1326 = vunpack.c.l.b16 %v940
    %v1327 = vunpack.c.h.b16 %v940
    %v1328 = vunpack.c.l.b16 %v941
    %v1329 = vunpack.c.h.b16 %v941
    %v1330 = vunpack.c.l.b16 %v942
    %v1331 = vunpack.c.h.b16 %v942
    %v1332 = vunpack.c.l.b16 %v943
    %v1333 = vpack.c.b16 %v1116, %v1109
    %v1334 = vpack.c.b16 %v1117, %v1110
    %v1335 = vpack.c.b16 %v1118, %v1111
    %v1336 = vpack.c.b16 %v1119, %v1112
    %v1337 = vpack.c.b16 %v1120, %v1113
    %v1338 = vpack.c.b16 %v1121, %v1114
    %v1339 = vpack.c.b16 %v1122, %v1115
    %v1340 = vpack.c.b16 %v1130, %v1123
    %v1341 = vpack.c.b16 %v1131, %v1124
    %v1342 = vpack.c.b16 %v1132, %v1125
    %v1343 = vpack.c.b16 %v1133, %v1126
    %v1344 = vpack.c.b16 %v1134, %v1127
    %v1345 = vpack.c.b16 %v1135, %v1128
    %v1346 = vpack.c.b16 %v1136, %v1129
    %v1347 = vpack.c.b16 %v1144, %v1137
    %v1348 = vpack.c.b16 %v1145, %v1138
    %v1349 = vpack.c.b16 %v1146, %v1139
    %v1350 = vpack.c.b16 %v1147, %v1140
    %v1351 = vpack.c.b16 %v1148, %v1141
    %v1352 = vpack.c.b16 %v1149, %v1142
    %v1353 = vpack.c.b16 %v1150, %v1143
    %v1354 = vpack.c.b16 %v1158, %v1151
    %v1355 = vpack.c.b16 %v1159, %v1152
    %v1356 = vpack.c.b16 %v1160, %v1153
    %v1357 = vpack.c.b16 %v1161, %v1154
    %v1358 = vpack.c.b16 %v1162, %v1155
    %v1359 = vpack.c.b16 %v1163, %v1156
    %v1360 = vpack.c.b16 %v1164, %v1157
    %v1361 = vpack.c.b16 %v1172, %v1165
    %v1362 = vpack.c.b16 %v1173, %v1166
    %v1363 = vpack.c.b16 %v1174, %v1167
    %v1364 = vpack.c.b16 %v1175, %v1168
    %v1365 = vpack.c.b16 %v1176, %v1169
    %v1366 = vpack.c.b16 %v1177, %v1170
    %v1367 = vpack.c.b16 %v1178, %v1171
    %v1368 = vpack.c.b16 %v1186, %v1179
    %v1369 = vpack.c.b16 %v1187, %v1180
    %v1370 = vpack.c.b16 %v1188, %v1181
    %v1371 = vpack.c.b16 %v1189, %v1182
    %v1372 = vpack.c.b16 %v1190, %v1183
    %v1373 = vpack.c.b16 %v1191, %v1184
    %v1374 = vpack.c.b16 %v1192, %v1185
    %v1375 = vpack.c.b16 %v1200, %v1193
    %v1376 = vpack.c.b16 %v1201, %v1194
    %v1377 = vpack.c.b16 %v1202, %v1195
    %v1378 = vpack.c.b16 %v1203, %v1196
    %v1379 = vpack.c.b16 %v1204, %v1197
    %v1380 = vpack.c.b16 %v1205, %v1198
    %v1381 = vpack.c.b16 %v1206, %v1199
    %v1382 = vpack.c.b16 %v1214, %v1207
    %v1383 = vpack.c.b16 %v1215, %v1208
    %v1384 = vpack.c.b16 %v1216, %v1209
    %v1385 = vpack.c.b16 %v1217, %v1210
    %v1386 = vpack.c.b16 %v1218, %v1211
    %v1387 = vpack.c.b16 %v1219, %v1212
    %v1388 = vpack.c.b16 %v1220, %v1213
    %v1389 = vpack.c.b16 %v1228, %v1221
    %v1390 = vpack.c.b16 %v1229, %v1222
    %v1391 = vpack.c.b16 %v1230, %v1223
    %v1392 = vpack.c.b16 %v1231, %v1224
    %v1393 = vpack.c.b16 %v1232, %v1225
    %v1394 = vpack.c.b16 %v1233, %v1226
    %v1395 = vpack.c.b16 %v1234, %v1227
    %v1396 = vpack.c.b16 %v1242, %v1235
    %v1397 = vpack.c.b16 %v1243, %v1236
    %v1398 = vpack.c.b16 %v1244, %v1237
    %v1399 = vpack.c.b16 %v1245, %v1238
    %v1400 = vpack.c.b16 %v1246, %v1239
    %v1401 = vpack.c.b16 %v1247, %v1240
    %v1402 = vpack.c.b16 %v1248, %v1241
    %v1403 = vpack.c.b16 %v1256, %v1249
    %v1404 = vpack.c.b16 %v1257, %v1250
    %v1405 = vpack.c.b16 %v1258, %v1251
    %v1406 = vpack.c.b16 %v1259, %v1252
    %v1407 = vpack.c.b16 %v1260, %v1253
    %v1408 = vpack.c.b16 %v1261, %v1254
    %v1409 = vpack.c.b16 %v1262, %v1255
    %v1410 = vpack.c.b16 %v1270, %v1263
    %v1411 = vpack.c.b16 %v1271, %v1264
    %v1412 = vpack.c.b16 %v1272, %v1265
    %v1413 = vpack.c.b16 %v1273, %v1266
    %v1414 = vpack.c.b16 %v1274, %v1267
    %v1415 = vpack.c.b16 %v1275, %v1268
    %v1416 = vpack.c.b16 %v1276, %v1269
    %v1417 = vpack.c.b16 %v1284, %v1277
    %v1418 = vpack.c.b16 %v1285, %v1278
    %v1419 = vpack.c.b16 %v1286, %v1279
    %v1420 = vpack.c.b16 %v1287, %v1280
    %v1421 = vpack.c.b16 %v1288, %v1281
    %v1422 = vpack.c.b16 %v1289, %v1282
    %v1423 = vpack.c.b16 %v1290, %v1283
    %v1424 = vpack.c.b16 %v1298, %v1291
    %v1425 = vpack.c.b16 %v1299, %v1292
    %v1426 = vpack.c.b16 %v1300, %v1293
    %v1427 = vpack.c.b16 %v1301, %v1294
    %v1428 = vpack.c.b16 %v1302, %v1295
    %v1429 = vpack.c.b16 %v1303, %v1296
    %v1430 = vpack.c.b16 %v1304, %v1297
    %v1431 = vpack.c.b16 %v1312, %v1305
    %v1432 = vpack.c.b16 %v1313, %v1306
    %v1433 = vpack.c.b16 %v1314, %v1307
    %v1434 = vpack.c.b16 %v1315, %v1308
    %v1435 = vpack.c.b16 %v1316, %v1309
    %v1436 = vpack.c.b16 %v1317, %v1310
    %v1437 = vpack.c.b16 %v1318, %v1311
    %v1438 = vpack.c.b16 %v1326, %v1319
    %v1439 = vpack.c.b16 %v1327, %v1320
    %v1440 = vpack.c.b16 %v1328, %v1321
    %v1441 = vpack.c.b16 %v1329, %v1322
    %v1442 = vpack.c.b16 %v1330, %v1323
    %v1443 = vpack.c.b16 %v1331, %v1324
    %v1444 = vpack.c.b16 %v1332, %v1325
    %1557 = vmatprep.subr.bf16.mxu0 %v1334
    %1558 = vmatpush1.bf16.msra.mxu0 %v1333
    %1559 = vmatprep.subr.bf16.mxu0 %v1341
    %1560 = vmatpush1.bf16.msra.mxu0 %v1340
    %1561 = vmatprep.subr.bf16.mxu0 %v1348
    %1562 = vmatpush1.bf16.msra.mxu0 %v1347
    %1563 = vmatprep.subr.bf16.mxu0 %v1355
    %1564 = vmatpush1.bf16.msra.mxu0 %v1354
    %1565 = vmatprep.subr.bf16.mxu0 %v1362
    %1566 = vmatpush1.bf16.msra.mxu0 %v1361
    %1567 = vmatprep.subr.bf16.mxu0 %v1369
    %1568 = vmatpush1.bf16.msra.mxu0 %v1368
    %1569 = vmatprep.subr.bf16.mxu0 %v1376
    %1570 = vmatpush1.bf16.msra.mxu0 %v1375
    %1571 = vmatprep.subr.bf16.mxu0 %v1383
    %1572 = vmatpush1.bf16.msra.mxu0 %v1382
    %1573 = vmatprep.subr.bf16.mxu0 %v1390
    %1574 = vmatpush1.bf16.msra.mxu0 %v1389
    %1575 = vmatprep.subr.bf16.mxu0 %v1397
    %1576 = vmatpush1.bf16.msra.mxu0 %v1396
    %1577 = vmatprep.subr.bf16.mxu0 %v1404
    %1578 = vmatpush1.bf16.msra.mxu0 %v1403
    %1579 = vmatprep.subr.bf16.mxu0 %v1411
    %1580 = vmatpush1.bf16.msra.mxu0 %v1410
    %1581 = vmatprep.subr.bf16.mxu0 %v1418
    %1582 = vmatpush1.bf16.msra.mxu0 %v1417
    %1583 = vmatprep.subr.bf16.mxu0 %v1425
    %1584 = vmatpush1.bf16.msra.mxu0 %v1424
    %1585 = vmatprep.subr.bf16.mxu0 %v1432
    %1586 = vmatpush1.bf16.msra.mxu0 %v1431
    %1587 = vmatprep.subr.bf16.mxu0 %v1439
    %1588 = vmatpush1.bf16.msra.mxu0 %v1438
    %1589 = vmatprep.mubr.bf16.mxu0 %v815
    %1590 = vmatmul.mubr.bf16.gmra.mrb[0].mxu0 %v814
    %v1591 = vpop.f32.mrb[0].mxu0
    %v1592 = vadd.f32 %v949, %v1591
    %v1593 = vpop.f32.mrb[0].mxu0
    %v1594 = vadd.f32 %v953, %v1593
    %v1595 = vpop.f32.mrb[0].mxu0
    %v1596 = vpop.f32.mrb[0].mxu0
    %1597 = vdwg.mxu0
    %1598 = vmatprep.subr.bf16.mxu0 %v1336
    %1599 = vmatpush1.bf16.msra.mxu0 %v1335
    %1600 = vmatprep.subr.bf16.mxu0 %v1343
    %1601 = vmatpush1.bf16.msra.mxu0 %v1342
    %1602 = vmatprep.subr.bf16.mxu0 %v1350
    %1603 = vmatpush1.bf16.msra.mxu0 %v1349
    %1604 = vmatprep.subr.bf16.mxu0 %v1357
    %1605 = vmatpush1.bf16.msra.mxu0 %v1356
    %1606 = vmatprep.subr.bf16.mxu0 %v1364
    %1607 = vmatpush1.bf16.msra.mxu0 %v1363
    %1608 = vmatprep.subr.bf16.mxu0 %v1371
    %1609 = vmatpush1.bf16.msra.mxu0 %v1370
    %1610 = vmatprep.subr.bf16.mxu0 %v1378
    %1611 = vmatpush1.bf16.msra.mxu0 %v1377
    %1612 = vmatprep.subr.bf16.mxu0 %v1385
    %1613 = vmatpush1.bf16.msra.mxu0 %v1384
    %1614 = vmatprep.subr.bf16.mxu0 %v1392
    %1615 = vmatpush1.bf16.msra.mxu0 %v1391
    %1616 = vmatprep.subr.bf16.mxu0 %v1399
    %1617 = vmatpush1.bf16.msra.mxu0 %v1398
    %1618 = vmatprep.subr.bf16.mxu0 %v1406
    %1619 = vmatpush1.bf16.msra.mxu0 %v1405
    %1620 = vmatprep.subr.bf16.mxu0 %v1413
    %1621 = vmatpush1.bf16.msra.mxu0 %v1412
    %1622 = vmatprep.subr.bf16.mxu0 %v1420
    %1623 = vmatpush1.bf16.msra.mxu0 %v1419
    %1624 = vmatprep.subr.bf16.mxu0 %v1427
    %1625 = vmatpush1.bf16.msra.mxu0 %v1426
    %1626 = vmatprep.subr.bf16.mxu0 %v1434
    %1627 = vmatpush1.bf16.msra.mxu0 %v1433
    %1628 = vmatprep.subr.bf16.mxu0 %v1441
    %1629 = vmatpush1.bf16.msra.mxu0 %v1440
    %1630 = vmatprep.mubr.bf16.mxu0 %v815
    %1631 = vmatmul.mubr.bf16.gmra.mrb[0].mxu0 %v814
    %v1632 = vpop.f32.mrb[0].mxu0
    %v1633 = vadd.f32 %v957, %v1632
    %v1634 = vpop.f32.mrb[0].mxu0
    %v1635 = vadd.f32 %v961, %v1634
    %v1636 = vpop.f32.mrb[0].mxu0
    %v1637 = vpop.f32.mrb[0].mxu0
    %1638 = vdwg.mxu0
    %1639 = vmatprep.subr.bf16.mxu0 %v1338
    %1640 = vmatpush1.bf16.msra.mxu0 %v1337
    %1641 = vmatprep.subr.bf16.mxu0 %v1345
    %1642 = vmatpush1.bf16.msra.mxu0 %v1344
    %1643 = vmatprep.subr.bf16.mxu0 %v1352
    %1644 = vmatpush1.bf16.msra.mxu0 %v1351
    %1645 = vmatprep.subr.bf16.mxu0 %v1359
    %1646 = vmatpush1.bf16.msra.mxu0 %v1358
    %1647 = vmatprep.subr.bf16.mxu0 %v1366
    %1648 = vmatpush1.bf16.msra.mxu0 %v1365
    %1649 = vmatprep.subr.bf16.mxu0 %v1373
    %1650 = vmatpush1.bf16.msra.mxu0 %v1372
    %1651 = vmatprep.subr.bf16.mxu0 %v1380
    %1652 = vmatpush1.bf16.msra.mxu0 %v1379
    %1653 = vmatprep.subr.bf16.mxu0 %v1387
    %1654 = vmatpush1.bf16.msra.mxu0 %v1386
    %1655 = vmatprep.subr.bf16.mxu0 %v1394
    %1656 = vmatpush1.bf16.msra.mxu0 %v1393
    %1657 = vmatprep.subr.bf16.mxu0 %v1401
    %1658 = vmatpush1.bf16.msra.mxu0 %v1400
    %1659 = vmatprep.subr.bf16.mxu0 %v1408
    %1660 = vmatpush1.bf16.msra.mxu0 %v1407
    %1661 = vmatprep.subr.bf16.mxu0 %v1415
    %1662 = vmatpush1.bf16.msra.mxu0 %v1414
    %1663 = vmatprep.subr.bf16.mxu0 %v1422
    %1664 = vmatpush1.bf16.msra.mxu0 %v1421
    %1665 = vmatprep.subr.bf16.mxu0 %v1429
    %1666 = vmatpush1.bf16.msra.mxu0 %v1428
    %1667 = vmatprep.subr.bf16.mxu0 %v1436
    %1668 = vmatpush1.bf16.msra.mxu0 %v1435
    %1669 = vmatprep.subr.bf16.mxu0 %v1443
    %1670 = vmatpush1.bf16.msra.mxu0 %v1442
    %1671 = vmatprep.mubr.bf16.mxu0 %v815
    %1672 = vmatmul.mubr.bf16.gmra.mrb[0].mxu0 %v814
    %v1673 = vpop.f32.mrb[0].mxu0
    %v1674 = vadd.f32 %v965, %v1673
    %v1675 = vpop.f32.mrb[0].mxu0
    %v1676 = vadd.f32 %v969, %v1675
    %v1677 = vpop.f32.mrb[0].mxu0
    %v1678 = vpop.f32.mrb[0].mxu0
    %1679 = vdwg.mxu0
    %1680 = vmatprep.subr.bf16.mxu0 0
    %1681 = vmatpush1.bf16.msra.mxu0 %v1339
    %1682 = vmatprep.subr.bf16.mxu0 0
    %1683 = vmatpush1.bf16.msra.mxu0 %v1346
    %1684 = vmatprep.subr.bf16.mxu0 0
    %1685 = vmatpush1.bf16.msra.mxu0 %v1353
    %1686 = vmatprep.subr.bf16.mxu0 0
    %1687 = vmatpush1.bf16.msra.mxu0 %v1360
    %1688 = vmatprep.subr.bf16.mxu0 0
    %1689 = vmatpush1.bf16.msra.mxu0 %v1367
    %1690 = vmatprep.subr.bf16.mxu0 0
    %1691 = vmatpush1.bf16.msra.mxu0 %v1374
    %1692 = vmatprep.subr.bf16.mxu0 0
    %1693 = vmatpush1.bf16.msra.mxu0 %v1381
    %1694 = vmatprep.subr.bf16.mxu0 0
    %1695 = vmatpush1.bf16.msra.mxu0 %v1388
    %1696 = vmatprep.subr.bf16.mxu0 0
    %1697 = vmatpush1.bf16.msra.mxu0 %v1395
    %1698 = vmatprep.subr.bf16.mxu0 0
    %1699 = vmatpush1.bf16.msra.mxu0 %v1402
    %1700 = vmatprep.subr.bf16.mxu0 0
    %1701 = vmatpush1.bf16.msra.mxu0 %v1409
    %1702 = vmatprep.subr.bf16.mxu0 0
    %1703 = vmatpush1.bf16.msra.mxu0 %v1416
    %1704 = vmatprep.subr.bf16.mxu0 0
    %1705 = vmatpush1.bf16.msra.mxu0 %v1423
    %1706 = vmatprep.subr.bf16.mxu0 0
    %1707 = vmatpush1.bf16.msra.mxu0 %v1430
    %1708 = vmatprep.subr.bf16.mxu0 0
    %1709 = vmatpush1.bf16.msra.mxu0 %v1437
    %1710 = vmatprep.subr.bf16.mxu0 0
    %1711 = vmatpush1.bf16.msra.mxu0 %v1444
    %1712 = vmatprep.mubr.bf16.mxu0 %v815
    %1713 = vmatmul.mubr.bf16.gmra.mrb[0].mxu0 %v814
    %v1714 = vpop.f32.mrb[0].mxu0
    %v1715 = vadd.f32 %v973, %v1714
    %v1716 = vpop.f32.mrb[0].mxu0
    %v1717 = vpop.f32.mrb[0].mxu0
    %v1718 = vpop.f32.mrb[0].mxu0
    %1719 = vdwg.mxu0
    %v1720 = vsub.f32 0.0, %v1592
    %v1721 = vsub.f32 0.0, %v1594
    %v1722 = vsub.f32 0.0, %v1633
    %v1723 = vsub.f32 0.0, %v1635
    %v1724 = vsub.f32 0.0, %v1674
    %v1725 = vsub.f32 0.0, %v1676
    %v1726 = vsub.f32 0.0, %v1715
    %v1727 = vmul.f32 %v1720, 1.442695
    %v1728 = vpow.pop %v1727
    %v1729 = vmul.f32 %v1721, 1.442695
    %v1730 = vpow.pop %v1729
    %v1731 = vmul.f32 %v1722, 1.442695
    %v1732 = vpow.pop %v1731
    %v1733 = vmul.f32 %v1723, 1.442695
    %v1734 = vpow.pop %v1733
    %v1735 = vmul.f32 %v1724, 1.442695
    %v1736 = vpow.pop %v1735
    %v1737 = vmul.f32 %v1725, 1.442695
    %v1738 = vpow.pop %v1737
    %v1739 = vmul.f32 %v1726, 1.442695
    %v1740 = vpow.pop %v1739
    %v1741 = vadd.f32 %v1728, 1.0
    %v1742 = vadd.f32 %v1730, 1.0
    %v1743 = vadd.f32 %v1732, 1.0
    %v1744 = vadd.f32 %v1734, 1.0
    %v1745 = vadd.f32 %v1736, 1.0
    %v1746 = vadd.f32 %v1738, 1.0
    %v1747 = vadd.f32 %v1740, 1.0
    %v1748 = vrcp.pop %v1741
    %v1749 = vrcp.pop %v1742
    %v1750 = vrcp.pop %v1743
    %v1751 = vrcp.pop %v1744
    %v1752 = vrcp.pop %v1745
    %v1753 = vrcp.pop %v1746
    %v1754 = vrcp.pop %v1747
    %v1762 = vcombine.low %v1748, %v1749
    %v1763 = vcombine.high %v1748, %v1749
    %v1764 = vcombine.low %v1750, %v1751
    %v1765 = vcombine.high %v1750, %v1751
    %v1767 = vunpack.c.l.s4 1983009808
    %v1768 = vunpack.c.0.s8 %v1767
    %v1769 = vlaneseq
    %v1770 = vshrl.u32 %v1769, 7
    %v1771 = vsub.s32 %v1768, %v1770
    %v1772 = vrot.slane %v1762, %v1771
    %v1774 = vunpack.c.l.s4 1983009808
    %v1775 = vunpack.c.0.s8 %v1774
    %v1776 = vlaneseq
    %v1777 = vshrl.u32 %v1776, 7
    %v1778 = vsub.s32 %v1775, %v1777
    %v1779 = vrot.slane %v1763, %v1778
    %v1781 = vunpack.c.l.s4 1983009808
    %v1782 = vunpack.c.0.s8 %v1781
    %v1783 = vlaneseq
    %v1784 = vshrl.u32 %v1783, 7
    %v1785 = vsub.s32 %v1782, %v1784
    %v1786 = vrot.slane %v1764, %v1785
    %v1788 = vunpack.c.l.s4 1983009808
    %v1789 = vunpack.c.0.s8 %v1788
    %v1790 = vlaneseq
    %v1791 = vshrl.u32 %v1790, 7
    %v1792 = vsub.s32 %v1789, %v1791
    %v1793 = vrot.slane %v1765, %v1792
    %v1794 = vcombine.low %v1772, %v1786
    %v1795 = vcombine.high %v1772, %v1786
    %v1796 = vcombine.low %v1779, %v1793
    %v1797 = vcombine.high %v1779, %v1793
    %v1798 = vcombine.low %v1752, %v1753
    %v1799 = vcombine.high %v1752, %v1753
    %v1800 = vcombine.high %v1754, %v1754
    %v1802 = vunpack.c.l.s4 1983009808
    %v1803 = vunpack.c.0.s8 %v1802
    %v1804 = vlaneseq
    %v1805 = vshrl.u32 %v1804, 7
    %v1806 = vsub.s32 %v1803, %v1805
    %v1807 = vrot.slane %v1798, %v1806
    %v1809 = vunpack.c.l.s4 1983009808
    %v1810 = vunpack.c.0.s8 %v1809
    %v1811 = vlaneseq
    %v1812 = vshrl.u32 %v1811, 7
    %v1813 = vsub.s32 %v1810, %v1812
    %v1814 = vrot.slane %v1799, %v1813
    %v1816 = vunpack.c.l.s4 1983009808
    %v1817 = vunpack.c.0.s8 %v1816
    %v1818 = vlaneseq
    %v1819 = vshrl.u32 %v1818, 7
    %v1820 = vsub.s32 %v1817, %v1819
    %v1821 = vrot.slane %v1754, %v1820
    %v1823 = vunpack.c.l.s4 1983009808
    %v1824 = vunpack.c.0.s8 %v1823
    %v1825 = vlaneseq
    %v1826 = vshrl.u32 %v1825, 7
    %v1827 = vsub.s32 %v1824, %v1826
    %v1828 = vrot.slane %v1800, %v1827
    %v1829 = vcombine.low %v1807, %v1821
    %v1830 = vcombine.high %v1807, %v1821
    %v1831 = vcombine.low %v1814, %v1828
    %v1832 = vcombine.high %v1814, %v1828
    %1841 = vst [vmem:[#allocation2] sm:$0xff] %v1794
    %vm1842 = vcmask 1041408
    %vm1843 = vcmask 1043458
    %vm1844 = vmor %vm1843, %vm1842
    %vm1845 = vcmask 128004
    %vm1846 = vmor %vm1845, %vm1844
    %1847 = vst.msk [vmem:[#allocation2 + $0x8] sm:$0x3f] %vm1846, %v1829
    %1848 = vst [vmem:[#allocation2 + $0xe] sm:$0xff] %v1795
    %1849 = vst.msk [vmem:[#allocation2 + $0x16] sm:$0x3f] %vm1846, %v1830
    %1850 = vst [vmem:[#allocation2 + $0x1c] sm:$0xff] %v1796
    %1851 = vst.msk [vmem:[#allocation2 + $0x24] sm:$0x3f] %vm1846, %v1831
    %1852 = vst [vmem:[#allocation2 + $0x2a] sm:$0xff] %v1797
    %1853 = vst.msk [vmem:[#allocation2 + $0x32] sm:$0x3f] %vm1846, %v1832
    // Predicated region
    $region30: #{tpu_custom_call.1} parent=1 // pred_check
      _
    $region31: #{tpu_custom_call.1} parent=1 // pred_check_branch
      %1855 = sbr.rel (0) target = $region33
    $region32: #{tpu_custom_call.1} parent=1 // pred_region
      %s1857 = ssub.s32 896, 224
      %1858 = vsyncadd [#allocation3], %s1857
      %s1859 = sshll.u32 [#allocation2], 4
      %s1860 = int_to_ptr.vmem [resolvable:$true] %s1859
      %1865 = dma.vmem_to_hbm [thread:$0]  %s1860, 224, %s7, [#allocation3], 224, 224, 14
    $region33: #{tpu_custom_call.1} parent=1 // pred_fallthru
      _
    // Predicated region
    $region34: #{tpu_custom_call.1} parent=1 // pred_check
      _
    $region35: #{tpu_custom_call.1} parent=1 // pred_check_branch
      %1867 = sbr.rel (0) target = $region37
    $region36: #{tpu_custom_call.1} parent=1 // pred_region
      %1868 = dma.done [#allocation3], 896
    $region37: #{tpu_custom_call.1} parent=1 // pred_fallthru
      _
    %1869 = vsyncpa [#allocation3], 1

</llo_original>
